<compile_context>
chip_gen: v7x
topology: tpu7x:2x2x1
jax: 0.10.0
libtpu: 0.0.40
codegen_flags: <defaults>
</compile_context>

<pallas_src>
import functools

import jax
import jax.numpy as jnp
from jax import lax
from jax.experimental import pallas as pl
from jax.experimental.pallas import tpu as pltpu

EPS = 1e-5


# ----------------------------- Pallas kernel ------------------------------ #
def _four_conv_res_block_kernel(W, x_ref, w1t_ref, w2f_ref, w4f_ref, p_ref,
                                m_ref, o_ref, win_ref):
    # x_ref  : (1, C, HW)  current batch element, HW = H*W on lanes
    # w1t_ref: (C, C)      1x1 conv weight, (out, in)
    # w2f_ref: (C, 9*C)    3x3 conv weight, (out, tap*in)  -- im2col layout
    # w4f_ref: (C, 9*C)
    # p_ref  : (C, 6)      columns: [g1, b1, g2, b2, g4, b4]
    # m_ref  : (9, HW)     0/1 zero-padding masks, one row per 3x3 tap
    # win_ref: (9*C, HW)   VMEM scratch holding the im2col window tensor
    x = x_ref[0]                                        # (C, HW) f32
    C, HW = x.shape

    g1, b1 = p_ref[:, 0:1], p_ref[:, 1:2]
    g2, b2 = p_ref[:, 2:3], p_ref[:, 3:4]
    g4, b4 = p_ref[:, 4:5], p_ref[:, 5:6]
    masks = m_ref[...]                                  # (9, HW)

    def inorm_relu(a, g, b):
        # per-channel stats over the full spatial extent (lane reduction)
        mean = jnp.mean(a, axis=1, keepdims=True)                   # (C, 1)
        var = jnp.mean((a - mean) ** 2, axis=1, keepdims=True)      # biased
        return jnp.maximum((a - mean) * lax.rsqrt(var + EPS) * g + b, 0.0)

    def conv3x3(a, wf_ref):
        # im2col: 9 lane-rolled + edge-masked copies of `a` into win_ref,
        # then a single MXU matmul with K = 9*C.
        for ky in range(3):
            for kx in range(3):
                dy, dx = ky - 1, kx - 1
                t = ky * 3 + kx
                s = dy * W + dx              # flat lane shift for this tap
                if s == 0:
                    piece = a                # center tap: no shift, no mask
                else:
                    shifted = pltpu.roll(a, (-s) % HW, axis=1)
                    piece = jnp.where(masks[t:t + 1, :] != 0.0, shifted, 0.0)
                win_ref[pl.ds(t * C, C), :] = piece
        return jnp.dot(wf_ref[...], win_ref[...],
                       preferred_element_type=jnp.float32)          # (C, HW)

    # branch 1: IN -> ReLU -> 1x1 conv (single matmul)
    out1 = jnp.dot(w1t_ref[...], inorm_relu(x, g1, b1),
                   preferred_element_type=jnp.float32)
    # branch 2: IN -> ReLU -> 3x3 conv -> IN -> ReLU -> 3x3 conv
    h2 = conv3x3(inorm_relu(x, g2, b2), w2f_ref)
    out2 = conv3x3(inorm_relu(h2, g4, b4), w4f_ref)

    # lane-dense store (HW is a multiple of 128)
    o_ref[0] = x + out1 + out2


# ------------------------------- wrapper ----------------------------------- #
def four_conv_res_block_in(x_nchw, w1, w2, w4, params):
    """x_nchw: (N, C, H, W) f32.  w1: (C_in, C_out).  w2/w4: (3, 3, C_in, C_out)
    HWIO.  params: (6, C) rows = [g1, b1, g2, b2, g4, b4]."""
    N, C, H, W = x_nchw.shape
    HW = H * W

    # Free layout changes: no HBM transpose of the activation tensor.
    x = x_nchw.reshape(N, C, HW)
    w1t = jnp.transpose(w1)                                    # (C_out, C_in)
    w2f = jnp.transpose(w2, (3, 0, 1, 2)).reshape(C, 9 * C)    # (C_out, 9*C_in)
    w4f = jnp.transpose(w4, (3, 0, 1, 2)).reshape(C, 9 * C)
    p = jnp.transpose(params)                                  # (C, 6)

    # Zero-padding masks for the 9 taps of a SAME 3x3 conv, flattened to HW.
    ys, xs = jnp.meshgrid(jnp.arange(H), jnp.arange(W), indexing="ij")
    mask_rows = []
    for ky in range(3):
        for kx in range(3):
            dy, dx = ky - 1, kx - 1
            ok = ((ys + dy >= 0) & (ys + dy < H) &
                  (xs + dx >= 0) & (xs + dx < W))
            mask_rows.append(ok.reshape(-1))
    masks = jnp.stack(mask_rows).astype(jnp.float32)           # (9, HW)

    kernel = functools.partial(_four_conv_res_block_kernel, W)
    out = pl.pallas_call(
        kernel,
        out_shape=jax.ShapeDtypeStruct((N, C, HW), x.dtype),
        grid_spec=pltpu.PrefetchScalarGridSpec(
            num_scalar_prefetch=0,
            grid=(N,),
            in_specs=[
                pl.BlockSpec((1, C, HW), lambda b: (b, 0, 0)),   # activation
                pl.BlockSpec((C, C), lambda b: (0, 0)),          # w1 (out,in)
                pl.BlockSpec((C, 9 * C), lambda b: (0, 0)),      # w2 im2col
                pl.BlockSpec((C, 9 * C), lambda b: (0, 0)),      # w4 im2col
                pl.BlockSpec((C, 6), lambda b: (0, 0)),          # IN params
                pl.BlockSpec((9, HW), lambda b: (0, 0)),         # tap masks
            ],
            out_specs=pl.BlockSpec((1, C, HW), lambda b: (b, 0, 0)),
            scratch_shapes=[pltpu.VMEM((9 * C, HW), jnp.float32)],
        ),
        compiler_params=pltpu.CompilerParams(
            dimension_semantics=("parallel",),      # batch elements independent
            vmem_limit_bytes=32 * 1024 * 1024,
        ),
    )(x, w1t, w2f, w4f, p, masks)
    return out.reshape(N, C, H, W)


# --------------------------- pure-JAX reference ----------------------------- #
def _reference(x_nchw, w1, w2, w4, params):
    x = jnp.transpose(x_nchw, (0, 2, 3, 1))

    def inorm(a, g, b):
        mean = jnp.mean(a, axis=(1, 2), keepdims=True)
        var = jnp.mean((a - mean) ** 2, axis=(1, 2), keepdims=True)
        return (a - mean) / jnp.sqrt(var + EPS) * g + b

    def conv(a, w):
        return lax.conv_general_dilated(
            a, w, (1, 1), "SAME", dimension_numbers=("NHWC", "HWIO", "NHWC"))

    g1, b1, g2, b2, g4, b4 = params
    out1 = conv(jax.nn.relu(inorm(x, g1, b1)), w1[None, None])
    h2 = conv(jax.nn.relu(inorm(x, g2, b2)), w2)
    out2 = conv(jax.nn.relu(inorm(h2, g4, b4)), w4)
    return jnp.transpose(x + out1 + out2, (0, 3, 1, 2))


# ----------------------- deterministic parameter init ----------------------- #
def orthogonal_conv_weight(key, out_ch, in_ch, kh, kw):
    """Mimics _get_orthogonal_init_weights; returns HWIO layout."""
    fan_out, fan_in = out_ch, in_ch * kh * kw
    a = jax.random.normal(key, (fan_out, fan_in), jnp.float32)
    u, _, v = jnp.linalg.svd(a, full_matrices=False)
    w = u if u.shape == (fan_out, fan_in) else v
    w_oihw = w.reshape(out_ch, in_ch, kh, kw)
    return jnp.transpose(w_oihw, (2, 3, 1, 0)).astype(jnp.float32)  # HWIO


if __name__ == "__main__":
    key = jax.random.PRNGKey(0)
    kx, k1, k2, k4, kg, kb = jax.random.split(key, 6)

    N, C, H, W = 2, 4, 16, 16                      # in_channels == out_channels
    x = jax.random.normal(kx, (N, C, H, W), jnp.float32)

    w1 = orthogonal_conv_weight(k1, C, C, 1, 1)[0, 0]    # (C_in, C_out)
    w2 = orthogonal_conv_weight(k2, C, C, 3, 3)          # (3, 3, C_in, C_out)
    w4 = orthogonal_conv_weight(k4, C, C, 3, 3)

    gammas = 1.0 + 0.1 * jax.random.normal(kg, (3, C), jnp.float32)
    betas = 0.1 * jax.random.normal(kb, (3, C), jnp.float32)
    params = jnp.stack(
        [gammas[0], betas[0], gammas[1], betas[1], gammas[2], betas[2]], axis=0)

    out = four_conv_res_block_in(x, w1, w2, w4, params)
    out = jax.block_until_ready(out)

    ref = _reference(x, w1, w2, w4, params)
    assert out.shape == (N, C, H, W)
    err = float(jnp.max(jnp.abs(out - ref)))
    assert jnp.allclose(out, ref, atol=1e-4, rtol=1e-4), f"max abs err {err}"

    print("KERNEL_OK")
</pallas_src>

<mosaic_0001>
module attributes {stable_mosaic.version = 11 : i64} {
  func.func @_four_conv_res_block_kernel(%arg0: i32, %arg1: memref<1x4x256xf32, #tpu.memory_space<vmem>>, %arg2: memref<4x4xf32, #tpu.memory_space<vmem>>, %arg3: memref<4x36xf32, #tpu.memory_space<vmem>>, %arg4: memref<4x36xf32, #tpu.memory_space<vmem>>, %arg5: memref<4x6xf32, #tpu.memory_space<vmem>>, %arg6: memref<9x256xf32, #tpu.memory_space<vmem>>, %arg7: memref<1x4x256xf32, #tpu.memory_space<vmem>>, %arg8: memref<36x256xf32, #tpu.memory_space<vmem>>) attributes {dimension_semantics = [#tpu.dimension_semantics<parallel>], iteration_bounds = array<i64: 2>, scalar_prefetch = 0 : i64, scratch_operands = 1 : i64, tpu.core_type = #tpu.core_type<tc>, window_params = [{transform_indices = @transform_0, window_bounds = array<i64: 1, 4, 256>}, {pipeline_mode = #tpu.pipeline_mode<synchronous>, transform_indices = @transform_1, window_bounds = array<i64: 4, 4>}, {pipeline_mode = #tpu.pipeline_mode<synchronous>, transform_indices = @transform_2, window_bounds = array<i64: 4, 36>}, {pipeline_mode = #tpu.pipeline_mode<synchronous>, transform_indices = @transform_3, window_bounds = array<i64: 4, 36>}, {pipeline_mode = #tpu.pipeline_mode<synchronous>, transform_indices = @transform_4, window_bounds = array<i64: 4, 6>}, {pipeline_mode = #tpu.pipeline_mode<synchronous>, transform_indices = @transform_5, window_bounds = array<i64: 9, 256>}, {transform_indices = @transform_6, window_bounds = array<i64: 1, 4, 256>}]} {
    %c0 = arith.constant 0 : index
    %c0_0 = arith.constant 0 : index
    %c0_1 = arith.constant 0 : index
    %0 = vector.load %arg1[%c0, %c0_0, %c0_1] : memref<1x4x256xf32, #tpu.memory_space<vmem>>, vector<1x4x256xf32>
    %1 = vector.shape_cast %0 : vector<1x4x256xf32> to vector<4x256xf32>
    %c0_2 = arith.constant 0 : index
    %c0_3 = arith.constant 0 : index
    %2 = vector.load %arg5[%c0_2, %c0_3] : memref<4x6xf32, #tpu.memory_space<vmem>>, vector<4x1xf32>
    %c0_4 = arith.constant 0 : index
    %c1 = arith.constant 1 : index
    %3 = vector.load %arg5[%c0_4, %c1] : memref<4x6xf32, #tpu.memory_space<vmem>>, vector<4x1xf32>
    %c0_5 = arith.constant 0 : index
    %c2 = arith.constant 2 : index
    %4 = vector.load %arg5[%c0_5, %c2] : memref<4x6xf32, #tpu.memory_space<vmem>>, vector<4x1xf32>
    %c0_6 = arith.constant 0 : index
    %c3 = arith.constant 3 : index
    %5 = vector.load %arg5[%c0_6, %c3] : memref<4x6xf32, #tpu.memory_space<vmem>>, vector<4x1xf32>
    %c0_7 = arith.constant 0 : index
    %c4 = arith.constant 4 : index
    %6 = vector.load %arg5[%c0_7, %c4] : memref<4x6xf32, #tpu.memory_space<vmem>>, vector<4x1xf32>
    %c0_8 = arith.constant 0 : index
    %c5 = arith.constant 5 : index
    %7 = vector.load %arg5[%c0_8, %c5] : memref<4x6xf32, #tpu.memory_space<vmem>>, vector<4x1xf32>
    %c0_9 = arith.constant 0 : index
    %c0_10 = arith.constant 0 : index
    %8 = vector.load %arg6[%c0_9, %c0_10] : memref<9x256xf32, #tpu.memory_space<vmem>>, vector<9x256xf32>
    %c0_11 = arith.constant 0 : index
    %c0_12 = arith.constant 0 : index
    %9 = vector.load %arg2[%c0_11, %c0_12] : memref<4x4xf32, #tpu.memory_space<vmem>>, vector<4x4xf32>
    %cst = arith.constant dense<0.000000e+00> : vector<4xf32>
    %10 = vector.multi_reduction <add>, %1, %cst [1] : vector<4x256xf32> to vector<4xf32>
    %11 = vector.shape_cast %10 : vector<4xf32> to vector<4x1xf32>
    %cst_13 = arith.constant 2.560000e+02 : f32
    %12 = vector.broadcast %cst_13 : f32 to vector<4x1xf32>
    %13 = arith.divf %11, %12 : vector<4x1xf32>
    %14 = vector.broadcast %13 : vector<4x1xf32> to vector<4x256xf32>
    %15 = arith.subf %1, %14 : vector<4x256xf32>
    %16 = arith.mulf %15, %15 : vector<4x256xf32>
    %cst_14 = arith.constant dense<0.000000e+00> : vector<4xf32>
    %17 = vector.multi_reduction <add>, %16, %cst_14 [1] : vector<4x256xf32> to vector<4xf32>
    %18 = vector.shape_cast %17 : vector<4xf32> to vector<4x1xf32>
    %cst_15 = arith.constant 2.560000e+02 : f32
    %19 = vector.broadcast %cst_15 : f32 to vector<4x1xf32>
    %20 = arith.divf %18, %19 : vector<4x1xf32>
    %21 = vector.broadcast %13 : vector<4x1xf32> to vector<4x256xf32>
    %22 = arith.subf %1, %21 : vector<4x256xf32>
    %cst_16 = arith.constant 9.99999974E-6 : f32
    %23 = vector.broadcast %cst_16 : f32 to vector<4x1xf32>
    %24 = arith.addf %20, %23 : vector<4x1xf32>
    %25 = math.rsqrt %24 : vector<4x1xf32>
    %26 = vector.broadcast %25 : vector<4x1xf32> to vector<4x256xf32>
    %27 = arith.mulf %22, %26 : vector<4x256xf32>
    %28 = vector.broadcast %2 : vector<4x1xf32> to vector<4x256xf32>
    %29 = arith.mulf %27, %28 : vector<4x256xf32>
    %30 = vector.broadcast %3 : vector<4x1xf32> to vector<4x256xf32>
    %31 = arith.addf %29, %30 : vector<4x256xf32>
    %cst_17 = arith.constant 0.000000e+00 : f32
    %32 = vector.broadcast %cst_17 : f32 to vector<4x256xf32>
    %33 = arith.maximumf %31, %32 : vector<4x256xf32>
    %cst_18 = arith.constant dense<0.000000e+00> : vector<4x256xf32>
    %34 = tpu.matmul %9, %33, %cst_18 {dimension_numbers = #tpu.dot_dimension_numbers<[1], [0], [0], [1], [0, 0, 1, 1], [], []>} : vector<4x4xf32>, vector<4x256xf32>, vector<4x256xf32> -> vector<4x256xf32>
    %cst_19 = arith.constant dense<0.000000e+00> : vector<4xf32>
    %35 = vector.multi_reduction <add>, %1, %cst_19 [1] : vector<4x256xf32> to vector<4xf32>
    %36 = vector.shape_cast %35 : vector<4xf32> to vector<4x1xf32>
    %cst_20 = arith.constant 2.560000e+02 : f32
    %37 = vector.broadcast %cst_20 : f32 to vector<4x1xf32>
    %38 = arith.divf %36, %37 : vector<4x1xf32>
    %39 = vector.broadcast %38 : vector<4x1xf32> to vector<4x256xf32>
    %40 = arith.subf %1, %39 : vector<4x256xf32>
    %41 = arith.mulf %40, %40 : vector<4x256xf32>
    %cst_21 = arith.constant dense<0.000000e+00> : vector<4xf32>
    %42 = vector.multi_reduction <add>, %41, %cst_21 [1] : vector<4x256xf32> to vector<4xf32>
    %43 = vector.shape_cast %42 : vector<4xf32> to vector<4x1xf32>
    %cst_22 = arith.constant 2.560000e+02 : f32
    %44 = vector.broadcast %cst_22 : f32 to vector<4x1xf32>
    %45 = arith.divf %43, %44 : vector<4x1xf32>
    %46 = vector.broadcast %38 : vector<4x1xf32> to vector<4x256xf32>
    %47 = arith.subf %1, %46 : vector<4x256xf32>
    %cst_23 = arith.constant 9.99999974E-6 : f32
    %48 = vector.broadcast %cst_23 : f32 to vector<4x1xf32>
    %49 = arith.addf %45, %48 : vector<4x1xf32>
    %50 = math.rsqrt %49 : vector<4x1xf32>
    %51 = vector.broadcast %50 : vector<4x1xf32> to vector<4x256xf32>
    %52 = arith.mulf %47, %51 : vector<4x256xf32>
    %53 = vector.broadcast %4 : vector<4x1xf32> to vector<4x256xf32>
    %54 = arith.mulf %52, %53 : vector<4x256xf32>
    %55 = vector.broadcast %5 : vector<4x1xf32> to vector<4x256xf32>
    %56 = arith.addf %54, %55 : vector<4x256xf32>
    %cst_24 = arith.constant 0.000000e+00 : f32
    %57 = vector.broadcast %cst_24 : f32 to vector<4x256xf32>
    %58 = arith.maximumf %56, %57 : vector<4x256xf32>
    %c17_i32 = arith.constant 17 : i32
    %59 = tpu.dynamic_rotate %58 by %c17_i32 dim 1 : vector<4x256xf32>, i32 -> vector<4x256xf32>
    %60 = vector.extract_strided_slice %8 {offsets = [0, 0], sizes = [1, 256], strides = [1, 1]} : vector<9x256xf32> to vector<1x256xf32>
    %cst_25 = arith.constant 0.000000e+00 : f32
    %61 = vector.broadcast %cst_25 : f32 to vector<1x256xf32>
    %62 = arith.cmpf one, %60, %61 : vector<1x256xf32>
    %cst_26 = arith.constant 0.000000e+00 : f32
    %63 = vector.shape_cast %62 : vector<1x256xi1> to vector<1x256xi1>
    %64 = vector.broadcast %63 : vector<1x256xi1> to vector<4x256xi1>
    %65 = vector.broadcast %cst_26 : f32 to vector<4x256xf32>
    %66 = arith.select %64, %59, %65 : vector<4x256xi1>, vector<4x256xf32>
    %c0_27 = arith.constant 0 : index
    %c0_28 = arith.constant 0 : index
    %67 = vector.load %arg8[%c0_27, %c0_28] : memref<36x256xf32, #tpu.memory_space<vmem>>, vector<4x256xf32>
    tpu.vector_store %arg8[%c0_27, %c0_28], %66 {strides = array<i32>} : memref<36x256xf32, #tpu.memory_space<vmem>>, vector<4x256xf32>,
    %c16_i32 = arith.constant 16 : i32
    %68 = tpu.dynamic_rotate %58 by %c16_i32 dim 1 : vector<4x256xf32>, i32 -> vector<4x256xf32>
    %69 = vector.extract_strided_slice %8 {offsets = [1, 0], sizes = [1, 256], strides = [1, 1]} : vector<9x256xf32> to vector<1x256xf32>
    %cst_29 = arith.constant 0.000000e+00 : f32
    %70 = vector.broadcast %cst_29 : f32 to vector<1x256xf32>
    %71 = arith.cmpf one, %69, %70 : vector<1x256xf32>
    %cst_30 = arith.constant 0.000000e+00 : f32
    %72 = vector.shape_cast %71 : vector<1x256xi1> to vector<1x256xi1>
    %73 = vector.broadcast %72 : vector<1x256xi1> to vector<4x256xi1>
    %74 = vector.broadcast %cst_30 : f32 to vector<4x256xf32>
    %75 = arith.select %73, %68, %74 : vector<4x256xi1>, vector<4x256xf32>
    %c4_31 = arith.constant 4 : index
    %c0_32 = arith.constant 0 : index
    %76 = vector.load %arg8[%c4_31, %c0_32] : memref<36x256xf32, #tpu.memory_space<vmem>>, vector<4x256xf32>
    tpu.vector_store %arg8[%c4_31, %c0_32], %75 {strides = array<i32>} : memref<36x256xf32, #tpu.memory_space<vmem>>, vector<4x256xf32>,
    %c15_i32 = arith.constant 15 : i32
    %77 = tpu.dynamic_rotate %58 by %c15_i32 dim 1 : vector<4x256xf32>, i32 -> vector<4x256xf32>
    %78 = vector.extract_strided_slice %8 {offsets = [2, 0], sizes = [1, 256], strides = [1, 1]} : vector<9x256xf32> to vector<1x256xf32>
    %cst_33 = arith.constant 0.000000e+00 : f32
    %79 = vector.broadcast %cst_33 : f32 to vector<1x256xf32>
    %80 = arith.cmpf one, %78, %79 : vector<1x256xf32>
    %cst_34 = arith.constant 0.000000e+00 : f32
    %81 = vector.shape_cast %80 : vector<1x256xi1> to vector<1x256xi1>
    %82 = vector.broadcast %81 : vector<1x256xi1> to vector<4x256xi1>
    %83 = vector.broadcast %cst_34 : f32 to vector<4x256xf32>
    %84 = arith.select %82, %77, %83 : vector<4x256xi1>, vector<4x256xf32>
    %c8 = arith.constant 8 : index
    %c0_35 = arith.constant 0 : index
    %85 = vector.load %arg8[%c8, %c0_35] : memref<36x256xf32, #tpu.memory_space<vmem>>, vector<4x256xf32>
    tpu.vector_store %arg8[%c8, %c0_35], %84 {strides = array<i32>} : memref<36x256xf32, #tpu.memory_space<vmem>>, vector<4x256xf32>,
    %c1_i32 = arith.constant 1 : i32
    %86 = tpu.dynamic_rotate %58 by %c1_i32 dim 1 : vector<4x256xf32>, i32 -> vector<4x256xf32>
    %87 = vector.extract_strided_slice %8 {offsets = [3, 0], sizes = [1, 256], strides = [1, 1]} : vector<9x256xf32> to vector<1x256xf32>
    %cst_36 = arith.constant 0.000000e+00 : f32
    %88 = vector.broadcast %cst_36 : f32 to vector<1x256xf32>
    %89 = arith.cmpf one, %87, %88 : vector<1x256xf32>
    %cst_37 = arith.constant 0.000000e+00 : f32
    %90 = vector.shape_cast %89 : vector<1x256xi1> to vector<1x256xi1>
    %91 = vector.broadcast %90 : vector<1x256xi1> to vector<4x256xi1>
    %92 = vector.broadcast %cst_37 : f32 to vector<4x256xf32>
    %93 = arith.select %91, %86, %92 : vector<4x256xi1>, vector<4x256xf32>
    %c12 = arith.constant 12 : index
    %c0_38 = arith.constant 0 : index
    %94 = vector.load %arg8[%c12, %c0_38] : memref<36x256xf32, #tpu.memory_space<vmem>>, vector<4x256xf32>
    tpu.vector_store %arg8[%c12, %c0_38], %93 {strides = array<i32>} : memref<36x256xf32, #tpu.memory_space<vmem>>, vector<4x256xf32>,
    %c16 = arith.constant 16 : index
    %c0_39 = arith.constant 0 : index
    %95 = vector.load %arg8[%c16, %c0_39] : memref<36x256xf32, #tpu.memory_space<vmem>>, vector<4x256xf32>
    tpu.vector_store %arg8[%c16, %c0_39], %58 {strides = array<i32>} : memref<36x256xf32, #tpu.memory_space<vmem>>, vector<4x256xf32>,
    %c255_i32 = arith.constant 255 : i32
    %96 = tpu.dynamic_rotate %58 by %c255_i32 dim 1 : vector<4x256xf32>, i32 -> vector<4x256xf32>
    %97 = vector.extract_strided_slice %8 {offsets = [5, 0], sizes = [1, 256], strides = [1, 1]} : vector<9x256xf32> to vector<1x256xf32>
    %cst_40 = arith.constant 0.000000e+00 : f32
    %98 = vector.broadcast %cst_40 : f32 to vector<1x256xf32>
    %99 = arith.cmpf one, %97, %98 : vector<1x256xf32>
    %cst_41 = arith.constant 0.000000e+00 : f32
    %100 = vector.shape_cast %99 : vector<1x256xi1> to vector<1x256xi1>
    %101 = vector.broadcast %100 : vector<1x256xi1> to vector<4x256xi1>
    %102 = vector.broadcast %cst_41 : f32 to vector<4x256xf32>
    %103 = arith.select %101, %96, %102 : vector<4x256xi1>, vector<4x256xf32>
    %c20 = arith.constant 20 : index
    %c0_42 = arith.constant 0 : index
    %104 = vector.load %arg8[%c20, %c0_42] : memref<36x256xf32, #tpu.memory_space<vmem>>, vector<4x256xf32>
    tpu.vector_store %arg8[%c20, %c0_42], %103 {strides = array<i32>} : memref<36x256xf32, #tpu.memory_space<vmem>>, vector<4x256xf32>,
    %c241_i32 = arith.constant 241 : i32
    %105 = tpu.dynamic_rotate %58 by %c241_i32 dim 1 : vector<4x256xf32>, i32 -> vector<4x256xf32>
    %106 = vector.extract_strided_slice %8 {offsets = [6, 0], sizes = [1, 256], strides = [1, 1]} : vector<9x256xf32> to vector<1x256xf32>
    %cst_43 = arith.constant 0.000000e+00 : f32
    %107 = vector.broadcast %cst_43 : f32 to vector<1x256xf32>
    %108 = arith.cmpf one, %106, %107 : vector<1x256xf32>
    %cst_44 = arith.constant 0.000000e+00 : f32
    %109 = vector.shape_cast %108 : vector<1x256xi1> to vector<1x256xi1>
    %110 = vector.broadcast %109 : vector<1x256xi1> to vector<4x256xi1>
    %111 = vector.broadcast %cst_44 : f32 to vector<4x256xf32>
    %112 = arith.select %110, %105, %111 : vector<4x256xi1>, vector<4x256xf32>
    %c24 = arith.constant 24 : index
    %c0_45 = arith.constant 0 : index
    %113 = vector.load %arg8[%c24, %c0_45] : memref<36x256xf32, #tpu.memory_space<vmem>>, vector<4x256xf32>
    tpu.vector_store %arg8[%c24, %c0_45], %112 {strides = array<i32>} : memref<36x256xf32, #tpu.memory_space<vmem>>, vector<4x256xf32>,
    %c240_i32 = arith.constant 240 : i32
    %114 = tpu.dynamic_rotate %58 by %c240_i32 dim 1 : vector<4x256xf32>, i32 -> vector<4x256xf32>
    %115 = vector.extract_strided_slice %8 {offsets = [7, 0], sizes = [1, 256], strides = [1, 1]} : vector<9x256xf32> to vector<1x256xf32>
    %cst_46 = arith.constant 0.000000e+00 : f32
    %116 = vector.broadcast %cst_46 : f32 to vector<1x256xf32>
    %117 = arith.cmpf one, %115, %116 : vector<1x256xf32>
    %cst_47 = arith.constant 0.000000e+00 : f32
    %118 = vector.shape_cast %117 : vector<1x256xi1> to vector<1x256xi1>
    %119 = vector.broadcast %118 : vector<1x256xi1> to vector<4x256xi1>
    %120 = vector.broadcast %cst_47 : f32 to vector<4x256xf32>
    %121 = arith.select %119, %114, %120 : vector<4x256xi1>, vector<4x256xf32>
    %c28 = arith.constant 28 : index
    %c0_48 = arith.constant 0 : index
    %122 = vector.load %arg8[%c28, %c0_48] : memref<36x256xf32, #tpu.memory_space<vmem>>, vector<4x256xf32>
    tpu.vector_store %arg8[%c28, %c0_48], %121 {strides = array<i32>} : memref<36x256xf32, #tpu.memory_space<vmem>>, vector<4x256xf32>,
    %c239_i32 = arith.constant 239 : i32
    %123 = tpu.dynamic_rotate %58 by %c239_i32 dim 1 : vector<4x256xf32>, i32 -> vector<4x256xf32>
    %124 = vector.extract_strided_slice %8 {offsets = [8, 0], sizes = [1, 256], strides = [1, 1]} : vector<9x256xf32> to vector<1x256xf32>
    %cst_49 = arith.constant 0.000000e+00 : f32
    %125 = vector.broadcast %cst_49 : f32 to vector<1x256xf32>
    %126 = arith.cmpf one, %124, %125 : vector<1x256xf32>
    %cst_50 = arith.constant 0.000000e+00 : f32
    %127 = vector.shape_cast %126 : vector<1x256xi1> to vector<1x256xi1>
    %128 = vector.broadcast %127 : vector<1x256xi1> to vector<4x256xi1>
    %129 = vector.broadcast %cst_50 : f32 to vector<4x256xf32>
    %130 = arith.select %128, %123, %129 : vector<4x256xi1>, vector<4x256xf32>
    %c32 = arith.constant 32 : index
    %c0_51 = arith.constant 0 : index
    %131 = vector.load %arg8[%c32, %c0_51] : memref<36x256xf32, #tpu.memory_space<vmem>>, vector<4x256xf32>
    tpu.vector_store %arg8[%c32, %c0_51], %130 {strides = array<i32>} : memref<36x256xf32, #tpu.memory_space<vmem>>, vector<4x256xf32>,
    %c0_52 = arith.constant 0 : index
    %c0_53 = arith.constant 0 : index
    %132 = vector.load %arg3[%c0_52, %c0_53] : memref<4x36xf32, #tpu.memory_space<vmem>>, vector<4x36xf32>
    %c0_54 = arith.constant 0 : index
    %c0_55 = arith.constant 0 : index
    %133 = vector.load %arg8[%c0_54, %c0_55] : memref<36x256xf32, #tpu.memory_space<vmem>>, vector<36x256xf32>
    %cst_56 = arith.constant dense<0.000000e+00> : vector<4x256xf32>
    %134 = tpu.matmul %132, %133, %cst_56 {dimension_numbers = #tpu.dot_dimension_numbers<[1], [0], [0], [1], [0, 0, 1, 1], [], []>} : vector<4x36xf32>, vector<36x256xf32>, vector<4x256xf32> -> vector<4x256xf32>
    %cst_57 = arith.constant dense<0.000000e+00> : vector<4xf32>
    %135 = vector.multi_reduction <add>, %134, %cst_57 [1] : vector<4x256xf32> to vector<4xf32>
    %136 = vector.shape_cast %135 : vector<4xf32> to vector<4x1xf32>
    %cst_58 = arith.constant 2.560000e+02 : f32
    %137 = vector.broadcast %cst_58 : f32 to vector<4x1xf32>
    %138 = arith.divf %136, %137 : vector<4x1xf32>
    %139 = vector.broadcast %138 : vector<4x1xf32> to vector<4x256xf32>
    %140 = arith.subf %134, %139 : vector<4x256xf32>
    %141 = arith.mulf %140, %140 : vector<4x256xf32>
    %cst_59 = arith.constant dense<0.000000e+00> : vector<4xf32>
    %142 = vector.multi_reduction <add>, %141, %cst_59 [1] : vector<4x256xf32> to vector<4xf32>
    %143 = vector.shape_cast %142 : vector<4xf32> to vector<4x1xf32>
    %cst_60 = arith.constant 2.560000e+02 : f32
    %144 = vector.broadcast %cst_60 : f32 to vector<4x1xf32>
    %145 = arith.divf %143, %144 : vector<4x1xf32>
    %146 = vector.broadcast %138 : vector<4x1xf32> to vector<4x256xf32>
    %147 = arith.subf %134, %146 : vector<4x256xf32>
    %cst_61 = arith.constant 9.99999974E-6 : f32
    %148 = vector.broadcast %cst_61 : f32 to vector<4x1xf32>
    %149 = arith.addf %145, %148 : vector<4x1xf32>
    %150 = math.rsqrt %149 : vector<4x1xf32>
    %151 = vector.broadcast %150 : vector<4x1xf32> to vector<4x256xf32>
    %152 = arith.mulf %147, %151 : vector<4x256xf32>
    %153 = vector.broadcast %6 : vector<4x1xf32> to vector<4x256xf32>
    %154 = arith.mulf %152, %153 : vector<4x256xf32>
    %155 = vector.broadcast %7 : vector<4x1xf32> to vector<4x256xf32>
    %156 = arith.addf %154, %155 : vector<4x256xf32>
    %cst_62 = arith.constant 0.000000e+00 : f32
    %157 = vector.broadcast %cst_62 : f32 to vector<4x256xf32>
    %158 = arith.maximumf %156, %157 : vector<4x256xf32>
    %c17_i32_63 = arith.constant 17 : i32
    %159 = tpu.dynamic_rotate %158 by %c17_i32_63 dim 1 : vector<4x256xf32>, i32 -> vector<4x256xf32>
    %160 = vector.extract_strided_slice %8 {offsets = [0, 0], sizes = [1, 256], strides = [1, 1]} : vector<9x256xf32> to vector<1x256xf32>
    %cst_64 = arith.constant 0.000000e+00 : f32
    %161 = vector.broadcast %cst_64 : f32 to vector<1x256xf32>
    %162 = arith.cmpf one, %160, %161 : vector<1x256xf32>
    %cst_65 = arith.constant 0.000000e+00 : f32
    %163 = vector.shape_cast %162 : vector<1x256xi1> to vector<1x256xi1>
    %164 = vector.broadcast %163 : vector<1x256xi1> to vector<4x256xi1>
    %165 = vector.broadcast %cst_65 : f32 to vector<4x256xf32>
    %166 = arith.select %164, %159, %165 : vector<4x256xi1>, vector<4x256xf32>
    %c0_66 = arith.constant 0 : index
    %c0_67 = arith.constant 0 : index
    %167 = vector.load %arg8[%c0_66, %c0_67] : memref<36x256xf32, #tpu.memory_space<vmem>>, vector<4x256xf32>
    tpu.vector_store %arg8[%c0_66, %c0_67], %166 {strides = array<i32>} : memref<36x256xf32, #tpu.memory_space<vmem>>, vector<4x256xf32>,
    %c16_i32_68 = arith.constant 16 : i32
    %168 = tpu.dynamic_rotate %158 by %c16_i32_68 dim 1 : vector<4x256xf32>, i32 -> vector<4x256xf32>
    %169 = vector.extract_strided_slice %8 {offsets = [1, 0], sizes = [1, 256], strides = [1, 1]} : vector<9x256xf32> to vector<1x256xf32>
    %cst_69 = arith.constant 0.000000e+00 : f32
    %170 = vector.broadcast %cst_69 : f32 to vector<1x256xf32>
    %171 = arith.cmpf one, %169, %170 : vector<1x256xf32>
    %cst_70 = arith.constant 0.000000e+00 : f32
    %172 = vector.shape_cast %171 : vector<1x256xi1> to vector<1x256xi1>
    %173 = vector.broadcast %172 : vector<1x256xi1> to vector<4x256xi1>
    %174 = vector.broadcast %cst_70 : f32 to vector<4x256xf32>
    %175 = arith.select %173, %168, %174 : vector<4x256xi1>, vector<4x256xf32>
    %c4_71 = arith.constant 4 : index
    %c0_72 = arith.constant 0 : index
    %176 = vector.load %arg8[%c4_71, %c0_72] : memref<36x256xf32, #tpu.memory_space<vmem>>, vector<4x256xf32>
    tpu.vector_store %arg8[%c4_71, %c0_72], %175 {strides = array<i32>} : memref<36x256xf32, #tpu.memory_space<vmem>>, vector<4x256xf32>,
    %c15_i32_73 = arith.constant 15 : i32
    %177 = tpu.dynamic_rotate %158 by %c15_i32_73 dim 1 : vector<4x256xf32>, i32 -> vector<4x256xf32>
    %178 = vector.extract_strided_slice %8 {offsets = [2, 0], sizes = [1, 256], strides = [1, 1]} : vector<9x256xf32> to vector<1x256xf32>
    %cst_74 = arith.constant 0.000000e+00 : f32
    %179 = vector.broadcast %cst_74 : f32 to vector<1x256xf32>
    %180 = arith.cmpf one, %178, %179 : vector<1x256xf32>
    %cst_75 = arith.constant 0.000000e+00 : f32
    %181 = vector.shape_cast %180 : vector<1x256xi1> to vector<1x256xi1>
    %182 = vector.broadcast %181 : vector<1x256xi1> to vector<4x256xi1>
    %183 = vector.broadcast %cst_75 : f32 to vector<4x256xf32>
    %184 = arith.select %182, %177, %183 : vector<4x256xi1>, vector<4x256xf32>
    %c8_76 = arith.constant 8 : index
    %c0_77 = arith.constant 0 : index
    %185 = vector.load %arg8[%c8_76, %c0_77] : memref<36x256xf32, #tpu.memory_space<vmem>>, vector<4x256xf32>
    tpu.vector_store %arg8[%c8_76, %c0_77], %184 {strides = array<i32>} : memref<36x256xf32, #tpu.memory_space<vmem>>, vector<4x256xf32>,
    %c1_i32_78 = arith.constant 1 : i32
    %186 = tpu.dynamic_rotate %158 by %c1_i32_78 dim 1 : vector<4x256xf32>, i32 -> vector<4x256xf32>
    %187 = vector.extract_strided_slice %8 {offsets = [3, 0], sizes = [1, 256], strides = [1, 1]} : vector<9x256xf32> to vector<1x256xf32>
    %cst_79 = arith.constant 0.000000e+00 : f32
    %188 = vector.broadcast %cst_79 : f32 to vector<1x256xf32>
    %189 = arith.cmpf one, %187, %188 : vector<1x256xf32>
    %cst_80 = arith.constant 0.000000e+00 : f32
    %190 = vector.shape_cast %189 : vector<1x256xi1> to vector<1x256xi1>
    %191 = vector.broadcast %190 : vector<1x256xi1> to vector<4x256xi1>
    %192 = vector.broadcast %cst_80 : f32 to vector<4x256xf32>
    %193 = arith.select %191, %186, %192 : vector<4x256xi1>, vector<4x256xf32>
    %c12_81 = arith.constant 12 : index
    %c0_82 = arith.constant 0 : index
    %194 = vector.load %arg8[%c12_81, %c0_82] : memref<36x256xf32, #tpu.memory_space<vmem>>, vector<4x256xf32>
    tpu.vector_store %arg8[%c12_81, %c0_82], %193 {strides = array<i32>} : memref<36x256xf32, #tpu.memory_space<vmem>>, vector<4x256xf32>,
    %c16_83 = arith.constant 16 : index
    %c0_84 = arith.constant 0 : index
    %195 = vector.load %arg8[%c16_83, %c0_84] : memref<36x256xf32, #tpu.memory_space<vmem>>, vector<4x256xf32>
    tpu.vector_store %arg8[%c16_83, %c0_84], %158 {strides = array<i32>} : memref<36x256xf32, #tpu.memory_space<vmem>>, vector<4x256xf32>,
    %c255_i32_85 = arith.constant 255 : i32
    %196 = tpu.dynamic_rotate %158 by %c255_i32_85 dim 1 : vector<4x256xf32>, i32 -> vector<4x256xf32>
    %197 = vector.extract_strided_slice %8 {offsets = [5, 0], sizes = [1, 256], strides = [1, 1]} : vector<9x256xf32> to vector<1x256xf32>
    %cst_86 = arith.constant 0.000000e+00 : f32
    %198 = vector.broadcast %cst_86 : f32 to vector<1x256xf32>
    %199 = arith.cmpf one, %197, %198 : vector<1x256xf32>
    %cst_87 = arith.constant 0.000000e+00 : f32
    %200 = vector.shape_cast %199 : vector<1x256xi1> to vector<1x256xi1>
    %201 = vector.broadcast %200 : vector<1x256xi1> to vector<4x256xi1>
    %202 = vector.broadcast %cst_87 : f32 to vector<4x256xf32>
    %203 = arith.select %201, %196, %202 : vector<4x256xi1>, vector<4x256xf32>
    %c20_88 = arith.constant 20 : index
    %c0_89 = arith.constant 0 : index
    %204 = vector.load %arg8[%c20_88, %c0_89] : memref<36x256xf32, #tpu.memory_space<vmem>>, vector<4x256xf32>
    tpu.vector_store %arg8[%c20_88, %c0_89], %203 {strides = array<i32>} : memref<36x256xf32, #tpu.memory_space<vmem>>, vector<4x256xf32>,
    %c241_i32_90 = arith.constant 241 : i32
    %205 = tpu.dynamic_rotate %158 by %c241_i32_90 dim 1 : vector<4x256xf32>, i32 -> vector<4x256xf32>
    %206 = vector.extract_strided_slice %8 {offsets = [6, 0], sizes = [1, 256], strides = [1, 1]} : vector<9x256xf32> to vector<1x256xf32>
    %cst_91 = arith.constant 0.000000e+00 : f32
    %207 = vector.broadcast %cst_91 : f32 to vector<1x256xf32>
    %208 = arith.cmpf one, %206, %207 : vector<1x256xf32>
    %cst_92 = arith.constant 0.000000e+00 : f32
    %209 = vector.shape_cast %208 : vector<1x256xi1> to vector<1x256xi1>
    %210 = vector.broadcast %209 : vector<1x256xi1> to vector<4x256xi1>
    %211 = vector.broadcast %cst_92 : f32 to vector<4x256xf32>
    %212 = arith.select %210, %205, %211 : vector<4x256xi1>, vector<4x256xf32>
    %c24_93 = arith.constant 24 : index
    %c0_94 = arith.constant 0 : index
    %213 = vector.load %arg8[%c24_93, %c0_94] : memref<36x256xf32, #tpu.memory_space<vmem>>, vector<4x256xf32>
    tpu.vector_store %arg8[%c24_93, %c0_94], %212 {strides = array<i32>} : memref<36x256xf32, #tpu.memory_space<vmem>>, vector<4x256xf32>,
    %c240_i32_95 = arith.constant 240 : i32
    %214 = tpu.dynamic_rotate %158 by %c240_i32_95 dim 1 : vector<4x256xf32>, i32 -> vector<4x256xf32>
    %215 = vector.extract_strided_slice %8 {offsets = [7, 0], sizes = [1, 256], strides = [1, 1]} : vector<9x256xf32> to vector<1x256xf32>
    %cst_96 = arith.constant 0.000000e+00 : f32
    %216 = vector.broadcast %cst_96 : f32 to vector<1x256xf32>
    %217 = arith.cmpf one, %215, %216 : vector<1x256xf32>
    %cst_97 = arith.constant 0.000000e+00 : f32
    %218 = vector.shape_cast %217 : vector<1x256xi1> to vector<1x256xi1>
    %219 = vector.broadcast %218 : vector<1x256xi1> to vector<4x256xi1>
    %220 = vector.broadcast %cst_97 : f32 to vector<4x256xf32>
    %221 = arith.select %219, %214, %220 : vector<4x256xi1>, vector<4x256xf32>
    %c28_98 = arith.constant 28 : index
    %c0_99 = arith.constant 0 : index
    %222 = vector.load %arg8[%c28_98, %c0_99] : memref<36x256xf32, #tpu.memory_space<vmem>>, vector<4x256xf32>
    tpu.vector_store %arg8[%c28_98, %c0_99], %221 {strides = array<i32>} : memref<36x256xf32, #tpu.memory_space<vmem>>, vector<4x256xf32>,
    %c239_i32_100 = arith.constant 239 : i32
    %223 = tpu.dynamic_rotate %158 by %c239_i32_100 dim 1 : vector<4x256xf32>, i32 -> vector<4x256xf32>
    %224 = vector.extract_strided_slice %8 {offsets = [8, 0], sizes = [1, 256], strides = [1, 1]} : vector<9x256xf32> to vector<1x256xf32>
    %cst_101 = arith.constant 0.000000e+00 : f32
    %225 = vector.broadcast %cst_101 : f32 to vector<1x256xf32>
    %226 = arith.cmpf one, %224, %225 : vector<1x256xf32>
    %cst_102 = arith.constant 0.000000e+00 : f32
    %227 = vector.shape_cast %226 : vector<1x256xi1> to vector<1x256xi1>
    %228 = vector.broadcast %227 : vector<1x256xi1> to vector<4x256xi1>
    %229 = vector.broadcast %cst_102 : f32 to vector<4x256xf32>
    %230 = arith.select %228, %223, %229 : vector<4x256xi1>, vector<4x256xf32>
    %c32_103 = arith.constant 32 : index
    %c0_104 = arith.constant 0 : index
    %231 = vector.load %arg8[%c32_103, %c0_104] : memref<36x256xf32, #tpu.memory_space<vmem>>, vector<4x256xf32>
    tpu.vector_store %arg8[%c32_103, %c0_104], %230 {strides = array<i32>} : memref<36x256xf32, #tpu.memory_space<vmem>>, vector<4x256xf32>,
    %c0_105 = arith.constant 0 : index
    %c0_106 = arith.constant 0 : index
    %232 = vector.load %arg4[%c0_105, %c0_106] : memref<4x36xf32, #tpu.memory_space<vmem>>, vector<4x36xf32>
    %c0_107 = arith.constant 0 : index
    %c0_108 = arith.constant 0 : index
    %233 = vector.load %arg8[%c0_107, %c0_108] : memref<36x256xf32, #tpu.memory_space<vmem>>, vector<36x256xf32>
    %cst_109 = arith.constant dense<0.000000e+00> : vector<4x256xf32>
    %234 = tpu.matmul %232, %233, %cst_109 {dimension_numbers = #tpu.dot_dimension_numbers<[1], [0], [0], [1], [0, 0, 1, 1], [], []>} : vector<4x36xf32>, vector<36x256xf32>, vector<4x256xf32> -> vector<4x256xf32>
    %235 = arith.addf %1, %34 : vector<4x256xf32>
    %236 = arith.addf %235, %234 : vector<4x256xf32>
    %c0_110 = arith.constant 0 : index
    %c0_111 = arith.constant 0 : index
    %c0_112 = arith.constant 0 : index
    %237 = vector.load %arg7[%c0_110, %c0_111, %c0_112] : memref<1x4x256xf32, #tpu.memory_space<vmem>>, vector<1x4x256xf32>
    %238 = vector.shape_cast %237 : vector<1x4x256xf32> to vector<4x256xf32>
    %239 = vector.shape_cast %236 : vector<4x256xf32> to vector<1x4x256xf32>
    tpu.vector_store %arg7[%c0_110, %c0_111, %c0_112], %239 {strides = array<i32>} : memref<1x4x256xf32, #tpu.memory_space<vmem>>, vector<1x4x256xf32>,
    return
  }
  func.func @transform_0(%arg0: i32) -> (i32, i32, i32) {
    %c0_i32 = arith.constant 0 : i32
    %c0_i32_0 = arith.constant 0 : i32
    %c0_i32_1 = arith.constant 0 : i32
    return %arg0, %c0_i32, %c0_i32_0 : i32, i32, i32
  }
  func.func @transform_1(%arg0: i32) -> (i32, i32) {
    %c0_i32 = arith.constant 0 : i32
    %c0_i32_0 = arith.constant 0 : i32
    %c0_i32_1 = arith.constant 0 : i32
    return %c0_i32, %c0_i32_0 : i32, i32
  }
  func.func @transform_2(%arg0: i32) -> (i32, i32) {
    %c0_i32 = arith.constant 0 : i32
    %c0_i32_0 = arith.constant 0 : i32
    %c0_i32_1 = arith.constant 0 : i32
    return %c0_i32, %c0_i32_0 : i32, i32
  }
  func.func @transform_3(%arg0: i32) -> (i32, i32) {
    %c0_i32 = arith.constant 0 : i32
    %c0_i32_0 = arith.constant 0 : i32
    %c0_i32_1 = arith.constant 0 : i32
    return %c0_i32, %c0_i32_0 : i32, i32
  }
  func.func @transform_4(%arg0: i32) -> (i32, i32) {
    %c0_i32 = arith.constant 0 : i32
    %c0_i32_0 = arith.constant 0 : i32
    %c0_i32_1 = arith.constant 0 : i32
    return %c0_i32, %c0_i32_0 : i32, i32
  }
  func.func @transform_5(%arg0: i32) -> (i32, i32) {
    %c0_i32 = arith.constant 0 : i32
    %c0_i32_0 = arith.constant 0 : i32
    %c0_i32_1 = arith.constant 0 : i32
    return %c0_i32, %c0_i32_0 : i32, i32
  }
  func.func @transform_6(%arg0: i32) -> (i32, i32, i32) {
    %c0_i32 = arith.constant 0 : i32
    %c0_i32_0 = arith.constant 0 : i32
    %c0_i32_1 = arith.constant 0 : i32
    return %arg0, %c0_i32, %c0_i32_0 : i32, i32, i32
  }
}

</mosaic_0001>

<llo_original>
// kernel: tpu_custom_call.1
$region0: #{tpu_custom_call.1}
  #allocation0 [shape = 'u32[]', space=smem, size = 0x4, offset = 0x4, fixed_abs, tag = 'smem constant byte address 0x4 - core index']
  #allocation1 [shape = 'u32[144,128]{1,0:T(1,128)}', space=vmem, size = 0x12000, scoped, tag = 'internal scratch']
  #allocation2 [shape = 'f32[36,256]{1,0:T(8,128)}', space=vmem, size = 0xa000, scoped, tag = 'scratch operand']
  %s0 = inlined_call_operand.hbm [shape: f32[2,4,256], index: 0, kind: input, shape index: {}]
  %s1 = inlined_call_operand.hbm [shape: f32[4,4], index: 1, kind: input, shape index: {}]
  %s2 = inlined_call_operand.vmem [shape: f32[4,36], index: 2, kind: input, shape index: {}]
  %s3 = inlined_call_operand.vmem [shape: f32[4,36], index: 3, kind: input, shape index: {}]
  %s4 = inlined_call_operand.vmem [shape: f32[4,6], index: 4, kind: input, shape index: {}]
  %s5 = inlined_call_operand.hbm [shape: f32[9,256], index: 5, kind: input, shape index: {}]
  %s6 = inlined_call_operand.hbm [shape: f32[2,4,256], index: 6, kind: output, shape index: {}]
  %s7 = sld [smem:[#allocation0]]
  $region69: #{tpu_custom_call.1} parent=0
    _
  %s9 = ssub.s32 1, %s7
  %s10 = scalar_select 0, %s9, %s7
  $region1: #{tpu_custom_call.1} parent=0
    #allocation3 [shape = 'u8[8192]{0}', space=vmem, size = 0x2000, scoped, tag = 'input window, operand 0']
    #allocation4 [shape = 's32[2]{0}', space=sflag, size = 0x8, scoped, tag = 'scoped memory for tpu_custom_call.1']
    #allocation5 [shape = 's32[2]{0}', space=sflag, size = 0x8, scoped, tag = 'scoped memory for tpu_custom_call.1']
    #allocation6 [shape = 'u8[2048]{0}', space=vmem, size = 0x800, scoped, tag = 'input window, operand 1, single buffered']
    #allocation7 [shape = 's32[1]{0}', space=sflag, size = 0x4, scoped, tag = 'scoped memory for tpu_custom_call.1']
    #allocation8 [shape = 'u8[16384]{0}', space=vmem, size = 0x4000, scoped, tag = 'input window, operand 5, single buffered']
    #allocation9 [shape = 'u8[8192]{0}', space=vmem, size = 0x2000, scoped, tag = 'output window, operand 0']
    %11 = vsyncpa [#allocation4], 0
    %s12 = scalar_lea.sflag [#allocation4], 1
    %13 = vsyncpa %s12, 0
    %14 = vsyncpa [#allocation7], 0
    %15 = vsyncpa [#allocation5], 0
    %s16 = scalar_lea.sflag [#allocation5], 1
    %17 = vsyncpa %s16, 0
    loop: start=0, step=1, limit=4
    $region2: #{tpu_custom_call.1} parent=1 // loop_pre_header
      _
    $region3: #{tpu_custom_call.1} parent=1 // loop_header
      %s19 = sphi 0, %s23
      %p20 = scmp.ge.s32.totalorder %s19, 4
      %s29 = sphi 0, %s31
      %s32 = sphi 0, %s29
      %s33 = sphi 0, %s32
      %s49 = sphi 0, %s33
      %s53 = sphi 0, %s53
      %s55 = sphi 0, %s53
      %s56 = sphi 0, %s55
      %s70 = sphi 0, %s56
      %s74 = sphi 0, %s74
      %s76 = sphi 0, %s74
      %s77 = sphi 0, %s76
      %s91 = sphi 0, %s77
      %s95 = sphi 0, %s95
      %s97 = sphi 0, %s95
      %s98 = sphi 0, %s97
      %s112 = sphi 0, %s98
      %s116 = sphi 0, %s116
      %s118 = sphi 0, %s116
      %s119 = sphi 0, %s118
      %s133 = sphi 0, %s119
      %s137 = sphi 0, %s137
      %s139 = sphi 0, %s137
      %s140 = sphi 0, %s139
      %s154 = sphi 0, %s140
      %s160 = sphi 0, %s162
      %s163 = sphi 0, %s160
      %s164 = sphi 0, %s163
      %s180 = sphi 0, %s164
    $region4: #{tpu_custom_call.1} parent=1 // loop_header_branch
      %22 = sbr.rel (%p20) target = $region8
    $region5: #{tpu_custom_call.1} parent=1 // loop_body
      %s24 = ssub.s32 %s19, 1
      %s25 = ssub.s32 %s19, 2
      %s26 = sadd.s32 %s19, 1
      %s27 = ssub.s32 %s19, %s26
      %p28 = scmp.eq.s32.totalorder %s27, 0
      %s30 = sadd.s32 %s29, 1
      %s31 = scalar_select %p28, %s29, %s30
      %p34 = pneg %p28
      %p35 = scmp.eq.s32.totalorder %s19, 1
      %p36 = por %p34, %p35
      %p37 = scmp.ne.s32.totalorder %s29, %s32
      %p38 = scmp.eq.s32.totalorder %s19, 0
      %p39 = por %p37, %p38
      %p40 = scmp.ne.s32.totalorder %s29, %s32
      %p41 = scmp.eq.s32.totalorder %s24, 1
      %p42 = por %p40, %p41
      %p43 = scmp.ne.s32.totalorder %s32, %s33
      %p44 = scmp.eq.s32.totalorder %s24, 0
      %p45 = por %p43, %p44
      %p46 = scmp.ne.s32.totalorder %s32, %s33
      %p47 = scmp.eq.s32.totalorder %s25, 1
      %p48 = por %p46, %p47
      %p50 = scmp.ne.s32.totalorder %s33, %s49
      %p51 = scmp.eq.s32.totalorder %s25, 0
      %p52 = por %p50, %p51
      %s54 = sadd.s32 %s53, 1
      %p57 = scmp.eq.s32.totalorder %s19, 1
      %p58 = scmp.ne.s32.totalorder %s53, %s55
      %p59 = scmp.eq.s32.totalorder %s19, 0
      %p60 = por %p58, %p59
      %p61 = scmp.ne.s32.totalorder %s53, %s55
      %p62 = scmp.eq.s32.totalorder %s24, 1
      %p63 = por %p61, %p62
      %p64 = scmp.ne.s32.totalorder %s55, %s56
      %p65 = scmp.eq.s32.totalorder %s24, 0
      %p66 = por %p64, %p65
      %p67 = scmp.ne.s32.totalorder %s55, %s56
      %p68 = scmp.eq.s32.totalorder %s25, 1
      %p69 = por %p67, %p68
      %p71 = scmp.ne.s32.totalorder %s56, %s70
      %p72 = scmp.eq.s32.totalorder %s25, 0
      %p73 = por %p71, %p72
      %s75 = sadd.s32 %s74, 1
      %p78 = scmp.eq.s32.totalorder %s19, 1
      %p79 = scmp.ne.s32.totalorder %s74, %s76
      %p80 = scmp.eq.s32.totalorder %s19, 0
      %p81 = por %p79, %p80
      %p82 = scmp.ne.s32.totalorder %s74, %s76
      %p83 = scmp.eq.s32.totalorder %s24, 1
      %p84 = por %p82, %p83
      %p85 = scmp.ne.s32.totalorder %s76, %s77
      %p86 = scmp.eq.s32.totalorder %s24, 0
      %p87 = por %p85, %p86
      %p88 = scmp.ne.s32.totalorder %s76, %s77
      %p89 = scmp.eq.s32.totalorder %s25, 1
      %p90 = por %p88, %p89
      %p92 = scmp.ne.s32.totalorder %s77, %s91
      %p93 = scmp.eq.s32.totalorder %s25, 0
      %p94 = por %p92, %p93
      %s96 = sadd.s32 %s95, 1
      %p99 = scmp.eq.s32.totalorder %s19, 1
      %p100 = scmp.ne.s32.totalorder %s95, %s97
      %p101 = scmp.eq.s32.totalorder %s19, 0
      %p102 = por %p100, %p101
      %p103 = scmp.ne.s32.totalorder %s95, %s97
      %p104 = scmp.eq.s32.totalorder %s24, 1
      %p105 = por %p103, %p104
      %p106 = scmp.ne.s32.totalorder %s97, %s98
      %p107 = scmp.eq.s32.totalorder %s24, 0
      %p108 = por %p106, %p107
      %p109 = scmp.ne.s32.totalorder %s97, %s98
      %p110 = scmp.eq.s32.totalorder %s25, 1
      %p111 = por %p109, %p110
      %p113 = scmp.ne.s32.totalorder %s98, %s112
      %p114 = scmp.eq.s32.totalorder %s25, 0
      %p115 = por %p113, %p114
      %s117 = sadd.s32 %s116, 1
      %p120 = scmp.eq.s32.totalorder %s19, 1
      %p121 = scmp.ne.s32.totalorder %s116, %s118
      %p122 = scmp.eq.s32.totalorder %s19, 0
      %p123 = por %p121, %p122
      %p124 = scmp.ne.s32.totalorder %s116, %s118
      %p125 = scmp.eq.s32.totalorder %s24, 1
      %p126 = por %p124, %p125
      %p127 = scmp.ne.s32.totalorder %s118, %s119
      %p128 = scmp.eq.s32.totalorder %s24, 0
      %p129 = por %p127, %p128
      %p130 = scmp.ne.s32.totalorder %s118, %s119
      %p131 = scmp.eq.s32.totalorder %s25, 1
      %p132 = por %p130, %p131
      %p134 = scmp.ne.s32.totalorder %s119, %s133
      %p135 = scmp.eq.s32.totalorder %s25, 0
      %p136 = por %p134, %p135
      %s138 = sadd.s32 %s137, 1
      %p141 = scmp.eq.s32.totalorder %s19, 1
      %p142 = scmp.ne.s32.totalorder %s137, %s139
      %p143 = scmp.eq.s32.totalorder %s19, 0
      %p144 = por %p142, %p143
      %p145 = scmp.ne.s32.totalorder %s137, %s139
      %p146 = scmp.eq.s32.totalorder %s24, 1
      %p147 = por %p145, %p146
      %p148 = scmp.ne.s32.totalorder %s139, %s140
      %p149 = scmp.eq.s32.totalorder %s24, 0
      %p150 = por %p148, %p149
      %p151 = scmp.ne.s32.totalorder %s139, %s140
      %p152 = scmp.eq.s32.totalorder %s25, 1
      %p153 = por %p151, %p152
      %p155 = scmp.ne.s32.totalorder %s140, %s154
      %p156 = scmp.eq.s32.totalorder %s25, 0
      %p157 = por %p155, %p156
      %s158 = ssub.s32 %s19, %s26
      %p159 = scmp.eq.s32.totalorder %s158, 0
      %s161 = sadd.s32 %s160, 1
      %s162 = scalar_select %p159, %s160, %s161
      %p165 = pneg %p159
      %p166 = scmp.eq.s32.totalorder %s19, 1
      %p167 = por %p165, %p166
      %p168 = scmp.ne.s32.totalorder %s160, %s163
      %p169 = scmp.eq.s32.totalorder %s19, 0
      %p170 = por %p168, %p169
      %p171 = scmp.ne.s32.totalorder %s160, %s163
      %p172 = scmp.eq.s32.totalorder %s24, 1
      %p173 = por %p171, %p172
      %p174 = scmp.ne.s32.totalorder %s163, %s164
      %p175 = scmp.eq.s32.totalorder %s24, 0
      %p176 = por %p174, %p175
      %p177 = scmp.ne.s32.totalorder %s163, %s164
      %p178 = scmp.eq.s32.totalorder %s25, 1
      %p179 = por %p177, %p178
      %p181 = scmp.ne.s32.totalorder %s164, %s180
      %p182 = scmp.eq.s32.totalorder %s25, 0
      %p183 = por %p181, %p182
      %p184 = scmp.le.s32.totalorder 1, %s19
      %p185 = scmp.lt.s32.totalorder %s19, 3
      %p186 = pnand %p184, %p185
      %p187 = pneg %p186
      // Predicated region
      $region9: #{tpu_custom_call.1} parent=5 // pred_check
        _
      $region10: #{tpu_custom_call.1} parent=5 // pred_check_branch
        %189 = sbr.rel (%p186) target = $region12
      $region11: #{tpu_custom_call.1} parent=5 // pred_region
        %s190 = ssub.s32 %s19, 1
        // Predicated region
        $region13: #{tpu_custom_call.1} parent=11 // pred_check
          %p191 = pneg %p66
        $region14: #{tpu_custom_call.1} parent=11 // pred_check_branch
          %193 = sbr.rel (%p191) target = $region16
        $region15: #{tpu_custom_call.1} parent=11 // pred_region
          %s195 = ssub.s32 64, 64
          %196 = vsyncadd [#allocation7], %s195
          %s198 = sshll.u32 [#allocation6], 4
          %s199 = int_to_ptr.vmem [resolvable:$true] %s198
          %201 = dma.hbm_to_vmem [thread:$0]  %s1, 64, %s199, [#allocation7]
        $region16: #{tpu_custom_call.1} parent=11 // pred_fallthru
          _
        // Predicated region
        $region17: #{tpu_custom_call.1} parent=11 // pred_check
          %p202 = pneg %p87
        $region18: #{tpu_custom_call.1} parent=11 // pred_check_branch
          %204 = sbr.rel (%p202) target = $region20
        $region19: #{tpu_custom_call.1} parent=11 // pred_region
          _
        $region20: #{tpu_custom_call.1} parent=11 // pred_fallthru
          _
        // Predicated region
        $region21: #{tpu_custom_call.1} parent=11 // pred_check
          %p205 = pneg %p108
        $region22: #{tpu_custom_call.1} parent=11 // pred_check_branch
          %207 = sbr.rel (%p205) target = $region24
        $region23: #{tpu_custom_call.1} parent=11 // pred_region
          _
        $region24: #{tpu_custom_call.1} parent=11 // pred_fallthru
          _
        // Predicated region
        $region25: #{tpu_custom_call.1} parent=11 // pred_check
          %p208 = pneg %p129
        $region26: #{tpu_custom_call.1} parent=11 // pred_check_branch
          %210 = sbr.rel (%p208) target = $region28
        $region27: #{tpu_custom_call.1} parent=11 // pred_region
          _
        $region28: #{tpu_custom_call.1} parent=11 // pred_fallthru
          _
        // Predicated region
        $region29: #{tpu_custom_call.1} parent=11 // pred_check
          %p211 = pneg %p150
        $region30: #{tpu_custom_call.1} parent=11 // pred_check_branch
          %213 = sbr.rel (%p211) target = $region32
        $region31: #{tpu_custom_call.1} parent=11 // pred_region
          %s215 = ssub.s32 512, 512
          %216 = vsyncadd [#allocation7], %s215
          %s217 = sshll.u32 [#allocation8], 4
          %s218 = int_to_ptr.vmem [resolvable:$true] %s217
          %223 = dma.hbm_to_vmem [thread:$0]  %s5, 512, %s218, [#allocation7], 256, 256, 16
        $region32: #{tpu_custom_call.1} parent=11 // pred_fallthru
          _
      $region12: #{tpu_custom_call.1} parent=5 // pred_fallthru
        _
      %p224 = scmp.lt.s32.totalorder %s19, 2
      // Predicated region
      $region33: #{tpu_custom_call.1} parent=5 // pred_check
        %p225 = pneg %p224
      $region34: #{tpu_custom_call.1} parent=5 // pred_check_branch
        %227 = sbr.rel (%p225) target = $region36
      $region35: #{tpu_custom_call.1} parent=5 // pred_region
        // Predicated region
        $region37: #{tpu_custom_call.1} parent=35 // pred_check
          %p228 = pneg %p39
        $region38: #{tpu_custom_call.1} parent=35 // pred_check_branch
          %230 = sbr.rel (%p228) target = $region40
        $region39: #{tpu_custom_call.1} parent=35 // pred_region
          %s231 = sand.u32 %s29, 1
          %s232 = scalar_lea.sflag [#allocation4], %s231
          %s233 = sand.u32 %s29, 1
          %s234 = smul.addr %s233, 8
          %s235 = scalar_lea.vmem [#allocation3], %s234
          %s237 = ssub.s32 128, 128
          %238 = vsyncadd %s232, %s237
          %s239 = smul.addr %s19, 2
          %s240 = smul.addr %s239, 64
          %s241 = scalar_lea.hbm %s0, %s240
          %s243 = sshll.u32 %s235, 4
          %s244 = int_to_ptr.vmem [resolvable:$true] %s243
          %246 = dma.hbm_to_vmem [thread:$0]  %s241, 128, %s244, %s232
        $region40: #{tpu_custom_call.1} parent=35 // pred_fallthru
          _
      $region36: #{tpu_custom_call.1} parent=5 // pred_fallthru
        _
      %p247 = scmp.le.s32.totalorder 1, %s19
      %p248 = scmp.lt.s32.totalorder %s19, 3
      %p249 = pnand %p247, %p248
      %p250 = pneg %p249
      // Predicated region
      $region41: #{tpu_custom_call.1} parent=5 // pred_check
        _
      $region42: #{tpu_custom_call.1} parent=5 // pred_check_branch
        %252 = sbr.rel (%p249) target = $region44
      $region43: #{tpu_custom_call.1} parent=5 // pred_region
        %s253 = ssub.s32 %s19, 1
        %s254 = sand.u32 %s32, 1
        %s255 = scalar_lea.sflag [#allocation4], %s254
        %s256 = sand.u32 %s32, 1
        %s257 = smul.addr %s256, 8
        %s258 = scalar_lea.vmem [#allocation3], %s257
        // Predicated region
        $region45: #{tpu_custom_call.1} parent=43 // pred_check
          %p259 = pneg %p45
        $region46: #{tpu_custom_call.1} parent=43 // pred_check_branch
          %261 = sbr.rel (%p259) target = $region48
        $region47: #{tpu_custom_call.1} parent=43 // pred_region
          %262 = dma.done %s255, 128
        $region48: #{tpu_custom_call.1} parent=43 // pred_fallthru
          _
        // Predicated region
        $region49: #{tpu_custom_call.1} parent=43 // pred_check
          %p263 = pneg %p66
        $region50: #{tpu_custom_call.1} parent=43 // pred_check_branch
          %265 = sbr.rel (%p263) target = $region52
        $region51: #{tpu_custom_call.1} parent=43 // pred_region
          %266 = dma.done [#allocation7], 64
        $region52: #{tpu_custom_call.1} parent=43 // pred_fallthru
          _
        // Predicated region
        $region53: #{tpu_custom_call.1} parent=43 // pred_check
          %p267 = pneg %p150
        $region54: #{tpu_custom_call.1} parent=43 // pred_check_branch
          %269 = sbr.rel (%p267) target = $region56
        $region55: #{tpu_custom_call.1} parent=43 // pred_region
          %270 = dma.done [#allocation7], 512
        $region56: #{tpu_custom_call.1} parent=43 // pred_fallthru
          _
        %s271 = sand.u32 %s32, 1
        %s272 = scalar_lea.sflag [#allocation4], %s271
        %s273 = sand.u32 %s32, 1
        %s274 = smul.addr %s273, 8
        %s275 = scalar_lea.vmem [#allocation3], %s274
        %p276 = pneg %p45
        %p277 = pneg %p42
        %p278 = pneg %p66
        %p279 = pneg %p63
        %p280 = pneg %p87
        %p281 = pneg %p84
        %p282 = pneg %p108
        %p283 = pneg %p105
        %p284 = pneg %p129
        %p285 = pneg %p126
        %p286 = pneg %p150
        %p287 = pneg %p147
        %p288 = pneg %p176
        %p289 = pneg %p173
        %s290 = sand.u32 %s163, 1
        %s291 = scalar_lea.sflag [#allocation5], %s290
        %s292 = sand.u32 %s163, 1
        %s293 = smul.addr %s292, 8
        %s294 = scalar_lea.vmem [#allocation9], %s293
        %v295 = vld [vmem:[%s258] sm:$0xff]
        %v296 = vld [vmem:[%s4] sm:$0xf]
        %v297 = vld [vmem:[#allocation8] sm:$0xff]
        %v298 = vld [vmem:[#allocation8 + $0x8] sm:$0xff]
        %v299 = vld [vmem:[#allocation8 + $0x10] sm:$0x1]
        %v300 = vld [vmem:[#allocation8 + $0x18] sm:$0x1]
        %v301 = vld [vmem:[#allocation6] sm:$0xf]
        %v303 = vcombine.high %v295, %v295
        %vm305 = vcmask 1043456
        %v306 = vsel %vm305, %v295, 0.0
        %v307 = vsel %vm305, %v303, 0.0
        %v308 = vadd.f32 %v306, %v307
        %309 = vadd.xlane.f32.xlu0 %v308
        %v310 = vpop.xlane.xlu0 %309
        %v311 = vrcp.pop 256.0
        %v312 = vmul.f32 %v310, %v311
        %v315 = vunpack.c.l.s4 839922192
        %v316 = vunpack.c.0.s8 %v315
        %v317 = vlaneseq
        %v318 = vshrl.u32 %v317, 7
        %v319 = vsub.s32 %v316, %v318
        %v320 = vrot.slane %v312, %v319
        %v322 = vsub.f32 %v295, %v320
        %v323 = vmul.f32 %v322, %v322
        %v325 = vcombine.high %v323, %v323
        %v327 = vsel %vm305, %v323, 0.0
        %v328 = vsel %vm305, %v325, 0.0
        %v329 = vadd.f32 %v327, %v328
        %330 = vadd.xlane.f32.xlu0 %v329
        %v331 = vpop.xlane.xlu0 %330
        %v332 = vmul.f32 %v331, %v311
        %v333 = vadd.f32 %v332, 1e-05
        %v334 = vrsqrt.pop %v333
        %v337 = vunpack.c.l.s4 839922192
        %v338 = vunpack.c.0.s8 %v337
        %v339 = vlaneseq
        %v340 = vshrl.u32 %v339, 7
        %v341 = vsub.s32 %v338, %v340
        %v342 = vrot.slane %v334, %v341
        %v344 = vmul.f32 %v322, %v342
        %346 = vset.pattern.permute.xlu0 0
        %347 = vperm.xlu0 %346, %v296
        %v348 = vpop.permute.xlu0 %347
        %v350 = vunpack.c.l.s4 839922192
        %v351 = vunpack.c.0.s8 %v350
        %v352 = vlaneseq
        %v353 = vshrl.u32 %v352, 7
        %v354 = vsub.s32 %v351, %v353
        %v355 = vrot.slane %v348, %v354
        %v357 = vmul.f32 %v344, %v355
        %358 = vset.pattern.permute.xlu0 1
        %359 = vperm.xlu0 %358, %v296
        %v360 = vpop.permute.xlu0 %359
        %v362 = vunpack.c.l.s4 839922192
        %v363 = vunpack.c.0.s8 %v362
        %v364 = vlaneseq
        %v365 = vshrl.u32 %v364, 7
        %v366 = vsub.s32 %v363, %v365
        %v367 = vrot.slane %v360, %v366
        %v369 = vadd.f32 %v357, %v367
        %v370 = vmax.f32 %v369, 0.0
        %v372 = vcombine.high %v370, %v370
        %vm373 = vcmask 31744
        %v375 = vsel %vm373, %v301, 0
        %v377 = vsel %vm305, %v370, 0
        %v379 = vsel %vm305, %v372, 0
        %381 = vmatprep.subr.mxu0 %v379
        %382 = vmatpush1.msra.mxu0 %v377
        %383 = vmatprep.subr.mxu0 0.0
        %384 = vmatpush1.msra.mxu0 0.0
        %385 = vmatprep.subr.mxu0 0.0
        %386 = vmatpush1.msra.mxu0 0.0
        %387 = vmatprep.subr.mxu0 0.0
        %388 = vmatpush1.msra.mxu0 0.0
        %389 = vmatprep.subr.mxu0 0.0
        %390 = vmatpush1.msra.mxu0 0.0
        %391 = vmatprep.subr.mxu0 0.0
        %392 = vmatpush1.msra.mxu0 0.0
        %393 = vmatprep.subr.mxu0 0.0
        %394 = vmatpush1.msra.mxu0 0.0
        %395 = vmatprep.subr.mxu0 0.0
        %396 = vmatpush1.msra.mxu0 0.0
        %397 = vmatprep.subr.mxu0 0.0
        %398 = vmatpush1.msra.mxu0 0.0
        %399 = vmatprep.subr.mxu0 0.0
        %400 = vmatpush1.msra.mxu0 0.0
        %401 = vmatprep.subr.mxu0 0.0
        %402 = vmatpush1.msra.mxu0 0.0
        %403 = vmatprep.subr.mxu0 0.0
        %404 = vmatpush1.msra.mxu0 0.0
        %405 = vmatprep.subr.mxu0 0.0
        %406 = vmatpush1.msra.mxu0 0.0
        %407 = vmatprep.subr.mxu0 0.0
        %408 = vmatpush1.msra.mxu0 0.0
        %409 = vmatprep.subr.mxu0 0.0
        %410 = vmatpush1.msra.mxu0 0.0
        %411 = vmatprep.subr.mxu0 0.0
        %412 = vmatpush1.msra.mxu0 0.0
        %413 = vmatprep.subr.mxu0 0.0
        %414 = vmatpush1.msra.mxu0 0.0
        %415 = vmatprep.subr.mxu0 0.0
        %416 = vmatpush1.msra.mxu0 0.0
        %417 = vmatprep.subr.mxu0 0.0
        %418 = vmatpush1.msra.mxu0 0.0
        %419 = vmatprep.subr.mxu0 0.0
        %420 = vmatpush1.msra.mxu0 0.0
        %421 = vmatprep.subr.mxu0 0.0
        %422 = vmatpush1.msra.mxu0 0.0
        %423 = vmatprep.subr.mxu0 0.0
        %424 = vmatpush1.msra.mxu0 0.0
        %425 = vmatprep.subr.mxu0 0.0
        %426 = vmatpush1.msra.mxu0 0.0
        %427 = vmatprep.subr.mxu0 0.0
        %428 = vmatpush1.msra.mxu0 0.0
        %429 = vmatprep.subr.mxu0 0.0
        %430 = vmatpush1.msra.mxu0 0.0
        %431 = vmatprep.subr.mxu0 0.0
        %432 = vmatpush1.msra.mxu0 0.0
        %433 = vmatprep.subr.mxu0 0.0
        %434 = vmatpush1.msra.mxu0 0.0
        %435 = vmatprep.subr.mxu0 0.0
        %436 = vmatpush1.msra.mxu0 0.0
        %437 = vmatprep.subr.mxu0 0.0
        %438 = vmatpush1.msra.mxu0 0.0
        %439 = vmatprep.subr.mxu0 0.0
        %440 = vmatpush1.msra.mxu0 0.0
        %441 = vmatprep.subr.mxu0 0.0
        %442 = vmatpush1.msra.mxu0 0.0
        %443 = vmatprep.subr.mxu0 0.0
        %444 = vmatpush1.msra.mxu0 0.0
        %445 = vmatprep.mubr.f32.mxu0 0.0
        %446 = vmatmul.mubr.f32.gmra.mrb[0].mxu0 %v375
        %v447 = vpop.f32.mrb[0].mxu0
        %v448 = vadd.f32 0.0, %v447
        %v449 = vpop.f32.mrb[0].mxu0
        %v450 = vadd.f32 0.0, %v449
        %451 = vdwg.mxu0
        %452 = vset.pattern.permute.xlu0 2
        %453 = vperm.xlu0 %452, %v296
        %v454 = vpop.permute.xlu0 %453
        %v456 = vunpack.c.l.s4 839922192
        %v457 = vunpack.c.0.s8 %v456
        %v458 = vlaneseq
        %v459 = vshrl.u32 %v458, 7
        %v460 = vsub.s32 %v457, %v459
        %v461 = vrot.slane %v454, %v460
        %v463 = vmul.f32 %v344, %v461
        %464 = vset.pattern.permute.xlu0 3
        %465 = vperm.xlu0 %464, %v296
        %v466 = vpop.permute.xlu0 %465
        %v468 = vunpack.c.l.s4 839922192
        %v469 = vunpack.c.0.s8 %v468
        %v470 = vlaneseq
        %v471 = vshrl.u32 %v470, 7
        %v472 = vsub.s32 %v469, %v471
        %v473 = vrot.slane %v466, %v472
        %v475 = vadd.f32 %v463, %v473
        %v476 = vmax.f32 %v475, 0.0
        %v478 = vcombine.high %v476, %v476
        %480 = vrot.lane.b32.xlu0 %v476, 17
        %v481 = vpop.permute.xlu0 %480
        %482 = vrot.lane.b32.xlu0 %v478, 17
        %v483 = vpop.permute.xlu0 %482
        %v484 = vlaneseq
        %v485 = vand.u32 %v484, 127
        %vm486 = vcmp.lt.s32.totalorder %v485, 17
        %v487 = vsel %vm486, %v481, %v483
        %v488 = vsel %vm486, %v483, %v481
        %vm489 = vcmp.ne.f32.partialorder %v297, 0.0
        %vm490 = vcmp.ne.f32.partialorder %v298, 0.0
        %v491 = vsel %vm489, 1, 0
        %v492 = vsel %vm490, 1, 0
        %v493 = vlaneseq
        %v494 = vshrl.u32 %v493, 7
        %v495 = vsub.s32 0, %v494
        %v496 = vrot.slane %v491, %v495
        %v497 = vlaneseq
        %v498 = vshrl.u32 %v497, 7
        %v499 = vsub.s32 0, %v498
        %v500 = vrot.slane %v492, %v499
        %vm501 = vcmp.eq.s32.totalorder %v496, 1
        %vm502 = vcmp.eq.s32.totalorder %v500, 1
        %v503 = vsel %vm501, %v488, 0.0
        %v504 = vsel %vm502, %v487, 0.0
        %505 = vst [vmem:[#allocation2] sm:$0xf] %v503
        %506 = vst [vmem:[#allocation2 + $0x8] sm:$0xf] %v504
        %507 = vrot.lane.b32.xlu0 %v476, 16
        %v508 = vpop.permute.xlu0 %507
        %509 = vrot.lane.b32.xlu0 %v478, 16
        %v510 = vpop.permute.xlu0 %509
        %vm511 = vcmp.lt.s32.totalorder %v485, 16
        %v512 = vsel %vm511, %v508, %v510
        %v513 = vsel %vm511, %v510, %v508
        %v514 = vlaneseq
        %v515 = vshrl.u32 %v514, 7
        %v516 = vsub.s32 1, %v515
        %v517 = vrot.slane %v491, %v516
        %v518 = vlaneseq
        %v519 = vshrl.u32 %v518, 7
        %v520 = vsub.s32 1, %v519
        %v521 = vrot.slane %v492, %v520
        %vm522 = vcmp.eq.s32.totalorder %v517, 1
        %vm523 = vcmp.eq.s32.totalorder %v521, 1
        %v524 = vsel %vm522, %v513, 0.0
        %v525 = vsel %vm523, %v512, 0.0
        %v528 = vrot.slane %v524, 4
        %v529 = vrot.slane %v525, 4
        %532 = vst [vmem:[#allocation2] sm:$0xf0] %v528
        %533 = vst [vmem:[#allocation2 + $0x8] sm:$0xf0] %v529
        %534 = vrot.lane.b32.xlu0 %v476, 15
        %v535 = vpop.permute.xlu0 %534
        %536 = vrot.lane.b32.xlu0 %v478, 15
        %v537 = vpop.permute.xlu0 %536
        %vm538 = vcmp.lt.s32.totalorder %v485, 15
        %v539 = vsel %vm538, %v535, %v537
        %v540 = vsel %vm538, %v537, %v535
        %v541 = vlaneseq
        %v542 = vshrl.u32 %v541, 7
        %v543 = vsub.s32 2, %v542
        %v544 = vrot.slane %v491, %v543
        %v545 = vlaneseq
        %v546 = vshrl.u32 %v545, 7
        %v547 = vsub.s32 2, %v546
        %v548 = vrot.slane %v492, %v547
        %vm549 = vcmp.eq.s32.totalorder %v544, 1
        %vm550 = vcmp.eq.s32.totalorder %v548, 1
        %v551 = vsel %vm549, %v540, 0.0
        %v552 = vsel %vm550, %v539, 0.0
        %553 = vst [vmem:[#allocation2 + $0x10] sm:$0xf] %v551
        %554 = vst [vmem:[#allocation2 + $0x18] sm:$0xf] %v552
        %555 = vrot.lane.b32.xlu0 %v476, 1
        %v556 = vpop.permute.xlu0 %555
        %557 = vrot.lane.b32.xlu0 %v478, 1
        %v558 = vpop.permute.xlu0 %557
        %vm559 = vcmp.lt.s32.totalorder %v485, 1
        %v560 = vsel %vm559, %v556, %v558
        %v561 = vsel %vm559, %v558, %v556
        %v562 = vlaneseq
        %v563 = vshrl.u32 %v562, 7
        %v564 = vsub.s32 3, %v563
        %v565 = vrot.slane %v491, %v564
        %v566 = vlaneseq
        %v567 = vshrl.u32 %v566, 7
        %v568 = vsub.s32 3, %v567
        %v569 = vrot.slane %v492, %v568
        %vm570 = vcmp.eq.s32.totalorder %v565, 1
        %vm571 = vcmp.eq.s32.totalorder %v569, 1
        %v572 = vsel %vm570, %v561, 0.0
        %v573 = vsel %vm571, %v560, 0.0
        %v576 = vrot.slane %v572, 4
        %v577 = vrot.slane %v573, 4
        %580 = vst [vmem:[#allocation2 + $0x10] sm:$0xf0] %v576
        %581 = vst [vmem:[#allocation2 + $0x18] sm:$0xf0] %v577
        %582 = vst [vmem:[#allocation2 + $0x20] sm:$0xf] %v476
        %583 = vst [vmem:[#allocation2 + $0x28] sm:$0xf] %v478
        %584 = vrot.lane.b32.xlu0 %v476, 127
        %v585 = vpop.permute.xlu0 %584
        %586 = vrot.lane.b32.xlu0 %v478, 127
        %v587 = vpop.permute.xlu0 %586
        %vm588 = vcmp.lt.s32.totalorder %v485, 127
        %v589 = vsel %vm588, %v585, %v587
        %v590 = vsel %vm588, %v587, %v585
        %v591 = vlaneseq
        %v592 = vshrl.u32 %v591, 7
        %v593 = vsub.s32 5, %v592
        %v594 = vrot.slane %v491, %v593
        %v595 = vlaneseq
        %v596 = vshrl.u32 %v595, 7
        %v597 = vsub.s32 5, %v596
        %v598 = vrot.slane %v492, %v597
        %vm599 = vcmp.eq.s32.totalorder %v594, 1
        %vm600 = vcmp.eq.s32.totalorder %v598, 1
        %v601 = vsel %vm599, %v589, 0.0
        %v602 = vsel %vm600, %v590, 0.0
        %v605 = vrot.slane %v601, 4
        %v606 = vrot.slane %v602, 4
        %609 = vst [vmem:[#allocation2 + $0x20] sm:$0xf0] %v605
        %610 = vst [vmem:[#allocation2 + $0x28] sm:$0xf0] %v606
        %611 = vrot.lane.b32.xlu0 %v476, 113
        %v612 = vpop.permute.xlu0 %611
        %613 = vrot.lane.b32.xlu0 %v478, 113
        %v614 = vpop.permute.xlu0 %613
        %vm615 = vcmp.lt.s32.totalorder %v485, 113
        %v616 = vsel %vm615, %v612, %v614
        %v617 = vsel %vm615, %v614, %v612
        %v618 = vlaneseq
        %v619 = vshrl.u32 %v618, 7
        %v620 = vsub.s32 6, %v619
        %v621 = vrot.slane %v491, %v620
        %v622 = vlaneseq
        %v623 = vshrl.u32 %v622, 7
        %v624 = vsub.s32 6, %v623
        %v625 = vrot.slane %v492, %v624
        %vm626 = vcmp.eq.s32.totalorder %v621, 1
        %vm627 = vcmp.eq.s32.totalorder %v625, 1
        %v628 = vsel %vm626, %v616, 0.0
        %v629 = vsel %vm627, %v617, 0.0
        %630 = vst [vmem:[#allocation2 + $0x30] sm:$0xf] %v628
        %631 = vst [vmem:[#allocation2 + $0x38] sm:$0xf] %v629
        %632 = vrot.lane.b32.xlu0 %v476, 112
        %v633 = vpop.permute.xlu0 %632
        %634 = vrot.lane.b32.xlu0 %v478, 112
        %v635 = vpop.permute.xlu0 %634
        %vm636 = vcmp.lt.s32.totalorder %v485, 112
        %v637 = vsel %vm636, %v633, %v635
        %v638 = vsel %vm636, %v635, %v633
        %v639 = vlaneseq
        %v640 = vshrl.u32 %v639, 7
        %v641 = vsub.s32 7, %v640
        %v642 = vrot.slane %v491, %v641
        %v643 = vlaneseq
        %v644 = vshrl.u32 %v643, 7
        %v645 = vsub.s32 7, %v644
        %v646 = vrot.slane %v492, %v645
        %vm647 = vcmp.eq.s32.totalorder %v642, 1
        %vm648 = vcmp.eq.s32.totalorder %v646, 1
        %v649 = vsel %vm647, %v637, 0.0
        %v650 = vsel %vm648, %v638, 0.0
        %v653 = vrot.slane %v649, 4
        %v654 = vrot.slane %v650, 4
        %657 = vst [vmem:[#allocation2 + $0x30] sm:$0xf0] %v653
        %658 = vst [vmem:[#allocation2 + $0x38] sm:$0xf0] %v654
        %659 = vrot.lane.b32.xlu0 %v476, 111
        %v660 = vpop.permute.xlu0 %659
        %661 = vrot.lane.b32.xlu0 %v478, 111
        %v662 = vpop.permute.xlu0 %661
        %vm663 = vcmp.lt.s32.totalorder %v485, 111
        %v664 = vsel %vm663, %v660, %v662
        %v665 = vsel %vm663, %v662, %v660
        %vm666 = vcmp.ne.f32.partialorder %v299, 0.0
        %vm667 = vcmp.ne.f32.partialorder %v300, 0.0
        %v668 = vsel %vm666, 1, 0
        %v669 = vsel %vm667, 1, 0
        %v670 = vlaneseq
        %v671 = vshrl.u32 %v670, 7
        %v672 = vsub.s32 0, %v671
        %v673 = vrot.slane %v668, %v672
        %v674 = vlaneseq
        %v675 = vshrl.u32 %v674, 7
        %v676 = vsub.s32 0, %v675
        %v677 = vrot.slane %v669, %v676
        %vm678 = vcmp.eq.s32.totalorder %v673, 1
        %vm679 = vcmp.eq.s32.totalorder %v677, 1
        %v680 = vsel %vm678, %v664, 0.0
        %v681 = vsel %vm679, %v665, 0.0
        %682 = vst [vmem:[#allocation2 + $0x40] sm:$0xf] %v680
        %683 = vst [vmem:[#allocation2 + $0x48] sm:$0xf] %v681
        %v684 = vld [vmem:[%s2] sm:$0xf]
        %v685 = vld [vmem:[#allocation2] sm:$0xff]
        %v686 = vld [vmem:[#allocation2 + $0x8] sm:$0xff]
        %v687 = vld [vmem:[#allocation2 + $0x10] sm:$0xff]
        %v688 = vld [vmem:[#allocation2 + $0x18] sm:$0xff]
        %v689 = vld [vmem:[#allocation2 + $0x20] sm:$0xff]
        %v690 = vld [vmem:[#allocation2 + $0x28] sm:$0xff]
        %v691 = vld [vmem:[#allocation2 + $0x30] sm:$0xff]
        %v692 = vld [vmem:[#allocation2 + $0x38] sm:$0xff]
        %v693 = vld [vmem:[#allocation2 + $0x40] sm:$0xf]
        %v694 = vld [vmem:[#allocation2 + $0x48] sm:$0xf]
        %vm695 = vcmask 293888
        %v697 = vsel %vm695, %v684, 0
        %v700 = vsel %vm305, %v693, 0
        %v703 = vsel %vm305, %v694, 0
        %705 = vmatprep.subr.mxu0 %v686
        %706 = vmatpush1.msra.mxu0 %v685
        %707 = vmatprep.subr.mxu0 %v688
        %708 = vmatpush1.msra.mxu0 %v687
        %709 = vmatprep.subr.mxu0 %v690
        %710 = vmatpush1.msra.mxu0 %v689
        %711 = vmatprep.subr.mxu0 %v692
        %712 = vmatpush1.msra.mxu0 %v691
        %713 = vmatprep.subr.mxu0 %v703
        %714 = vmatpush1.msra.mxu0 %v700
        %715 = vmatprep.subr.mxu0 0.0
        %716 = vmatpush1.msra.mxu0 0.0
        %717 = vmatprep.subr.mxu0 0.0
        %718 = vmatpush1.msra.mxu0 0.0
        %719 = vmatprep.subr.mxu0 0.0
        %720 = vmatpush1.msra.mxu0 0.0
        %721 = vmatprep.subr.mxu0 0.0
        %722 = vmatpush1.msra.mxu0 0.0
        %723 = vmatprep.subr.mxu0 0.0
        %724 = vmatpush1.msra.mxu0 0.0
        %725 = vmatprep.subr.mxu0 0.0
        %726 = vmatpush1.msra.mxu0 0.0
        %727 = vmatprep.subr.mxu0 0.0
        %728 = vmatpush1.msra.mxu0 0.0
        %729 = vmatprep.subr.mxu0 0.0
        %730 = vmatpush1.msra.mxu0 0.0
        %731 = vmatprep.subr.mxu0 0.0
        %732 = vmatpush1.msra.mxu0 0.0
        %733 = vmatprep.subr.mxu0 0.0
        %734 = vmatpush1.msra.mxu0 0.0
        %735 = vmatprep.subr.mxu0 0.0
        %736 = vmatpush1.msra.mxu0 0.0
        %737 = vmatprep.subr.mxu0 0.0
        %738 = vmatpush1.msra.mxu0 0.0
        %739 = vmatprep.subr.mxu0 0.0
        %740 = vmatpush1.msra.mxu0 0.0
        %741 = vmatprep.subr.mxu0 0.0
        %742 = vmatpush1.msra.mxu0 0.0
        %743 = vmatprep.subr.mxu0 0.0
        %744 = vmatpush1.msra.mxu0 0.0
        %745 = vmatprep.subr.mxu0 0.0
        %746 = vmatpush1.msra.mxu0 0.0
        %747 = vmatprep.subr.mxu0 0.0
        %748 = vmatpush1.msra.mxu0 0.0
        %749 = vmatprep.subr.mxu0 0.0
        %750 = vmatpush1.msra.mxu0 0.0
        %751 = vmatprep.subr.mxu0 0.0
        %752 = vmatpush1.msra.mxu0 0.0
        %753 = vmatprep.subr.mxu0 0.0
        %754 = vmatpush1.msra.mxu0 0.0
        %755 = vmatprep.subr.mxu0 0.0
        %756 = vmatpush1.msra.mxu0 0.0
        %757 = vmatprep.subr.mxu0 0.0
        %758 = vmatpush1.msra.mxu0 0.0
        %759 = vmatprep.subr.mxu0 0.0
        %760 = vmatpush1.msra.mxu0 0.0
        %761 = vmatprep.subr.mxu0 0.0
        %762 = vmatpush1.msra.mxu0 0.0
        %763 = vmatprep.subr.mxu0 0.0
        %764 = vmatpush1.msra.mxu0 0.0
        %765 = vmatprep.subr.mxu0 0.0
        %766 = vmatpush1.msra.mxu0 0.0
        %767 = vmatprep.subr.mxu0 0.0
        %768 = vmatpush1.msra.mxu0 0.0
        %769 = vmatprep.mubr.f32.mxu0 0.0
        %770 = vmatmul.mubr.f32.gmra.mrb[0].mxu0 %v697
        %v771 = vpop.f32.mrb[0].mxu0
        %v772 = vadd.f32 0.0, %v771
        %v773 = vpop.f32.mrb[0].mxu0
        %v774 = vadd.f32 0.0, %v773
        %775 = vdwg.mxu0
        %v776 = vsel %vm305, %v772, 0.0
        %v777 = vsel %vm305, %v774, 0.0
        %v778 = vadd.f32 %v776, %v777
        %779 = vadd.xlane.f32.xlu0 %v778
        %v780 = vpop.xlane.xlu0 %779
        %v781 = vmul.f32 %v780, %v311
        %v782 = vsub.f32 %v772, %v781
        %v783 = vsub.f32 %v774, %v781
        %v784 = vmul.f32 %v782, %v782
        %v785 = vmul.f32 %v783, %v783
        %v786 = vsel %vm305, %v784, 0.0
        %v787 = vsel %vm305, %v785, 0.0
        %v788 = vadd.f32 %v786, %v787
        %789 = vadd.xlane.f32.xlu0 %v788
        %v790 = vpop.xlane.xlu0 %789
        %v791 = vmul.f32 %v790, %v311
        %v792 = vadd.f32 %v791, 1e-05
        %v793 = vrsqrt.pop %v792
        %v794 = vmul.f32 %v782, %v793
        %v795 = vmul.f32 %v783, %v793
        %796 = vset.pattern.permute.xlu0 4
        %797 = vperm.xlu0 %796, %v296
        %v798 = vpop.permute.xlu0 %797
        %v800 = vmul.f32 %v794, %v798
        %v801 = vmul.f32 %v795, %v798
        %802 = vset.pattern.permute.xlu0 5
        %803 = vperm.xlu0 %802, %v296
        %v804 = vpop.permute.xlu0 %803
        %v806 = vadd.f32 %v800, %v804
        %v807 = vadd.f32 %v801, %v804
        %v808 = vmax.f32 %v806, 0.0
        %v809 = vmax.f32 %v807, 0.0
        %810 = vrot.lane.b32.xlu0 %v808, 17
        %v811 = vpop.permute.xlu0 %810
        %812 = vrot.lane.b32.xlu0 %v809, 17
        %v813 = vpop.permute.xlu0 %812
        %v814 = vsel %vm486, %v811, %v813
        %v815 = vsel %vm486, %v813, %v811
        %v816 = vsel %vm501, %v815, 0.0
        %v817 = vsel %vm502, %v814, 0.0
        %818 = vst [vmem:[#allocation2] sm:$0xf] %v816
        %819 = vst [vmem:[#allocation2 + $0x8] sm:$0xf] %v817
        %820 = vrot.lane.b32.xlu0 %v808, 16
        %v821 = vpop.permute.xlu0 %820
        %822 = vrot.lane.b32.xlu0 %v809, 16
        %v823 = vpop.permute.xlu0 %822
        %v824 = vsel %vm511, %v821, %v823
        %v825 = vsel %vm511, %v823, %v821
        %v826 = vsel %vm522, %v825, 0.0
        %v827 = vsel %vm523, %v824, 0.0
        %v830 = vrot.slane %v826, 4
        %v831 = vrot.slane %v827, 4
        %834 = vst [vmem:[#allocation2] sm:$0xf0] %v830
        %835 = vst [vmem:[#allocation2 + $0x8] sm:$0xf0] %v831
        %836 = vrot.lane.b32.xlu0 %v808, 15
        %v837 = vpop.permute.xlu0 %836
        %838 = vrot.lane.b32.xlu0 %v809, 15
        %v839 = vpop.permute.xlu0 %838
        %v840 = vsel %vm538, %v837, %v839
        %v841 = vsel %vm538, %v839, %v837
        %v842 = vsel %vm549, %v841, 0.0
        %v843 = vsel %vm550, %v840, 0.0
        %844 = vst [vmem:[#allocation2 + $0x10] sm:$0xf] %v842
        %845 = vst [vmem:[#allocation2 + $0x18] sm:$0xf] %v843
        %846 = vrot.lane.b32.xlu0 %v808, 1
        %v847 = vpop.permute.xlu0 %846
        %848 = vrot.lane.b32.xlu0 %v809, 1
        %v849 = vpop.permute.xlu0 %848
        %v850 = vsel %vm559, %v847, %v849
        %v851 = vsel %vm559, %v849, %v847
        %v852 = vsel %vm570, %v851, 0.0
        %v853 = vsel %vm571, %v850, 0.0
        %v856 = vrot.slane %v852, 4
        %v857 = vrot.slane %v853, 4
        %860 = vst [vmem:[#allocation2 + $0x10] sm:$0xf0] %v856
        %861 = vst [vmem:[#allocation2 + $0x18] sm:$0xf0] %v857
        %862 = vst [vmem:[#allocation2 + $0x20] sm:$0xf] %v808
        %863 = vst [vmem:[#allocation2 + $0x28] sm:$0xf] %v809
        %864 = vrot.lane.b32.xlu0 %v808, 127
        %v865 = vpop.permute.xlu0 %864
        %866 = vrot.lane.b32.xlu0 %v809, 127
        %v867 = vpop.permute.xlu0 %866
        %v868 = vsel %vm588, %v865, %v867
        %v869 = vsel %vm588, %v867, %v865
        %v870 = vsel %vm599, %v868, 0.0
        %v871 = vsel %vm600, %v869, 0.0
        %v874 = vrot.slane %v870, 4
        %v875 = vrot.slane %v871, 4
        %878 = vst [vmem:[#allocation2 + $0x20] sm:$0xf0] %v874
        %879 = vst [vmem:[#allocation2 + $0x28] sm:$0xf0] %v875
        %880 = vrot.lane.b32.xlu0 %v808, 113
        %v881 = vpop.permute.xlu0 %880
        %882 = vrot.lane.b32.xlu0 %v809, 113
        %v883 = vpop.permute.xlu0 %882
        %v884 = vsel %vm615, %v881, %v883
        %v885 = vsel %vm615, %v883, %v881
        %v886 = vsel %vm626, %v884, 0.0
        %v887 = vsel %vm627, %v885, 0.0
        %888 = vst [vmem:[#allocation2 + $0x30] sm:$0xf] %v886
        %889 = vst [vmem:[#allocation2 + $0x38] sm:$0xf] %v887
        %890 = vrot.lane.b32.xlu0 %v808, 112
        %v891 = vpop.permute.xlu0 %890
        %892 = vrot.lane.b32.xlu0 %v809, 112
        %v893 = vpop.permute.xlu0 %892
        %v894 = vsel %vm636, %v891, %v893
        %v895 = vsel %vm636, %v893, %v891
        %v896 = vsel %vm647, %v894, 0.0
        %v897 = vsel %vm648, %v895, 0.0
        %v900 = vrot.slane %v896, 4
        %v901 = vrot.slane %v897, 4
        %904 = vst [vmem:[#allocation2 + $0x30] sm:$0xf0] %v900
        %905 = vst [vmem:[#allocation2 + $0x38] sm:$0xf0] %v901
        %906 = vrot.lane.b32.xlu0 %v808, 111
        %v907 = vpop.permute.xlu0 %906
        %908 = vrot.lane.b32.xlu0 %v809, 111
        %v909 = vpop.permute.xlu0 %908
        %v910 = vsel %vm663, %v907, %v909
        %v911 = vsel %vm663, %v909, %v907
        %v912 = vsel %vm678, %v910, 0.0
        %v913 = vsel %vm679, %v911, 0.0
        %914 = vst [vmem:[#allocation2 + $0x40] sm:$0xf] %v912
        %915 = vst [vmem:[#allocation2 + $0x48] sm:$0xf] %v913
        %v916 = vld [vmem:[%s3] sm:$0xf]
        %v917 = vld [vmem:[#allocation2] sm:$0xff]
        %v918 = vld [vmem:[#allocation2 + $0x8] sm:$0xff]
        %v919 = vld [vmem:[#allocation2 + $0x10] sm:$0xff]
        %v920 = vld [vmem:[#allocation2 + $0x18] sm:$0xff]
        %v921 = vld [vmem:[#allocation2 + $0x20] sm:$0xff]
        %v922 = vld [vmem:[#allocation2 + $0x28] sm:$0xff]
        %v923 = vld [vmem:[#allocation2 + $0x30] sm:$0xff]
        %v924 = vld [vmem:[#allocation2 + $0x38] sm:$0xff]
        %v925 = vld [vmem:[#allocation2 + $0x40] sm:$0xf]
        %v926 = vld [vmem:[#allocation2 + $0x48] sm:$0xf]
        %v928 = vsel %vm695, %v916, 0
        %v931 = vsel %vm305, %v925, 0
        %v934 = vsel %vm305, %v926, 0
        %936 = vmatprep.subr.mxu0 %v918
        %937 = vmatpush1.msra.mxu0 %v917
        %938 = vmatprep.subr.mxu0 %v920
        %939 = vmatpush1.msra.mxu0 %v919
        %940 = vmatprep.subr.mxu0 %v922
        %941 = vmatpush1.msra.mxu0 %v921
        %942 = vmatprep.subr.mxu0 %v924
        %943 = vmatpush1.msra.mxu0 %v923
        %944 = vmatprep.subr.mxu0 %v934
        %945 = vmatpush1.msra.mxu0 %v931
        %946 = vmatprep.subr.mxu0 0.0
        %947 = vmatpush1.msra.mxu0 0.0
        %948 = vmatprep.subr.mxu0 0.0
        %949 = vmatpush1.msra.mxu0 0.0
        %950 = vmatprep.subr.mxu0 0.0
        %951 = vmatpush1.msra.mxu0 0.0
        %952 = vmatprep.subr.mxu0 0.0
        %953 = vmatpush1.msra.mxu0 0.0
        %954 = vmatprep.subr.mxu0 0.0
        %955 = vmatpush1.msra.mxu0 0.0
        %956 = vmatprep.subr.mxu0 0.0
        %957 = vmatpush1.msra.mxu0 0.0
        %958 = vmatprep.subr.mxu0 0.0
        %959 = vmatpush1.msra.mxu0 0.0
        %960 = vmatprep.subr.mxu0 0.0
        %961 = vmatpush1.msra.mxu0 0.0
        %962 = vmatprep.subr.mxu0 0.0
        %963 = vmatpush1.msra.mxu0 0.0
        %964 = vmatprep.subr.mxu0 0.0
        %965 = vmatpush1.msra.mxu0 0.0
        %966 = vmatprep.subr.mxu0 0.0
        %967 = vmatpush1.msra.mxu0 0.0
        %968 = vmatprep.subr.mxu0 0.0
        %969 = vmatpush1.msra.mxu0 0.0
        %970 = vmatprep.subr.mxu0 0.0
        %971 = vmatpush1.msra.mxu0 0.0
        %972 = vmatprep.subr.mxu0 0.0
        %973 = vmatpush1.msra.mxu0 0.0
        %974 = vmatprep.subr.mxu0 0.0
        %975 = vmatpush1.msra.mxu0 0.0
        %976 = vmatprep.subr.mxu0 0.0
        %977 = vmatpush1.msra.mxu0 0.0
        %978 = vmatprep.subr.mxu0 0.0
        %979 = vmatpush1.msra.mxu0 0.0
        %980 = vmatprep.subr.mxu0 0.0
        %981 = vmatpush1.msra.mxu0 0.0
        %982 = vmatprep.subr.mxu0 0.0
        %983 = vmatpush1.msra.mxu0 0.0
        %984 = vmatprep.subr.mxu0 0.0
        %985 = vmatpush1.msra.mxu0 0.0
        %986 = vmatprep.subr.mxu0 0.0
        %987 = vmatpush1.msra.mxu0 0.0
        %988 = vmatprep.subr.mxu0 0.0
        %989 = vmatpush1.msra.mxu0 0.0
        %990 = vmatprep.subr.mxu0 0.0
        %991 = vmatpush1.msra.mxu0 0.0
        %992 = vmatprep.subr.mxu0 0.0
        %993 = vmatpush1.msra.mxu0 0.0
        %994 = vmatprep.subr.mxu0 0.0
        %995 = vmatpush1.msra.mxu0 0.0
        %996 = vmatprep.subr.mxu0 0.0
        %997 = vmatpush1.msra.mxu0 0.0
        %998 = vmatprep.subr.mxu0 0.0
        %999 = vmatpush1.msra.mxu0 0.0
        %1000 = vmatprep.mubr.f32.mxu0 0.0
        %1001 = vmatmul.mubr.f32.gmra.mrb[0].mxu0 %v928
        %v1002 = vpop.f32.mrb[0].mxu0
        %v1003 = vadd.f32 0.0, %v1002
        %v1004 = vpop.f32.mrb[0].mxu0
        %v1005 = vadd.f32 0.0, %v1004
        %1006 = vdwg.mxu0
        %v1009 = vcombine.low %v448, %v450
        %v1011 = vadd.f32 %v295, %v1009
        %v1014 = vcombine.low %v1003, %v1005
        %v1016 = vadd.f32 %v1011, %v1014
        %1017 = vst [vmem:[%s294] sm:$0xff] %v1016
        %s1018 = sand.u32 %s163, 1
        %s1019 = scalar_lea.sflag [#allocation5], %s1018
        %s1020 = sand.u32 %s163, 1
        %s1021 = smul.addr %s1020, 8
        %s1022 = scalar_lea.vmem [#allocation9], %s1021
        // Predicated region
        $region57: #{tpu_custom_call.1} parent=43 // pred_check
          %p1023 = pneg %p173
        $region58: #{tpu_custom_call.1} parent=43 // pred_check_branch
          %1025 = sbr.rel (%p1023) target = $region60
        $region59: #{tpu_custom_call.1} parent=43 // pred_region
          %s1027 = ssub.s32 128, 128
          %1028 = vsyncadd %s1019, %s1027
          %s1029 = smul.addr %s24, 2
          %s1030 = smul.addr %s1029, 64
          %s1031 = scalar_lea.hbm %s6, %s1030
          %s1033 = sshll.u32 %s1022, 4
          %s1034 = int_to_ptr.vmem [resolvable:$true] %s1033
          %1036 = dma.vmem_to_hbm [thread:$0]  %s1034, 128, %s1031, %s1019
        $region60: #{tpu_custom_call.1} parent=43 // pred_fallthru
          _
      $region44: #{tpu_custom_call.1} parent=5 // pred_fallthru
        _
      %p1037 = scmp.le.s32.totalorder 2, %s19
      // Predicated region
      $region61: #{tpu_custom_call.1} parent=5 // pred_check
        %p1038 = pneg %p1037
      $region62: #{tpu_custom_call.1} parent=5 // pred_check_branch
        %1040 = sbr.rel (%p1038) target = $region64
      $region63: #{tpu_custom_call.1} parent=5 // pred_region
        %s1041 = ssub.s32 %s19, 2
        // Predicated region
        $region65: #{tpu_custom_call.1} parent=63 // pred_check
          %p1042 = pneg %p179
        $region66: #{tpu_custom_call.1} parent=63 // pred_check_branch
          %1044 = sbr.rel (%p1042) target = $region68
        $region67: #{tpu_custom_call.1} parent=63 // pred_region
          %s1045 = sand.u32 %s164, 1
          %s1046 = scalar_lea.sflag [#allocation5], %s1045
          %s1047 = sand.u32 %s164, 1
          %s1048 = smul.addr %s1047, 8
          %s1049 = scalar_lea.vmem [#allocation9], %s1048
          %1050 = dma.done %s1046, 128
        $region68: #{tpu_custom_call.1} parent=63 // pred_fallthru
          _
      $region64: #{tpu_custom_call.1} parent=5 // pred_fallthru
        _
    $region6: #{tpu_custom_call.1} parent=1 // loop_footer
      %s23 = sadd.s32 1, %s19
    $region7: #{tpu_custom_call.1} parent=1 // loop_footer_branch
      %18 = sbr.rel target = $region3
    $region8: #{tpu_custom_call.1} parent=1 // loop_exit
      _
    %1051 = vsyncpa [#allocation4], 1
    %s1052 = scalar_lea.sflag [#allocation4], 1
    %1053 = vsyncpa %s1052, 1
    %1054 = vsyncpa [#allocation7], 1
    %1055 = vsyncpa [#allocation5], 1
    %s1056 = scalar_lea.sflag [#allocation5], 1
    %1057 = vsyncpa %s1056, 1

</llo_original>
